<compile_context>
chip_gen: v5e
topology: v5e:2x2
jax: 0.10.0
libtpu: 0.0.40
codegen_flags: <defaults>
</compile_context>

<pallas_src>
import functools

import jax
import jax.numpy as jnp
import numpy as np
from jax.experimental import pallas as pl
from jax.experimental.pallas import tpu as pltpu


# ----------------------------- config ---------------------------------------
HIDDEN_DIM = 32
VOCAB_SIZE = 16
EMBED_SIZE = 8
NUM_LAYERS = 2
DROP_OUT = 0.0          # dropout is a no-op at inference
BATCH = 2
SEQ = 8

B_PAD = 8               # f32 sublane count: pad batch so every op is full-tile
OUT_W = 128             # lane-dense output width (>= HIDDEN_DIM, multiple of 128)


# ----------------------------- fused kernel ---------------------------------
def fused_lstm_kernel(x_ref, len_ref, w0_ref, b0_ref, whh0_ref, *rest,
                      T, BP, H, num_layers, out_w):
    """Entire forward pass in a single kernel invocation (no grid).

      x_ref   : (T*BP, V)   time-major, batch-padded input
      len_ref : (BP, 1)     int32 sequence lengths (0 for padded rows)
      w0_ref  : (V, 4H)     embed folded into layer-0 input projection
      b0_ref  : (1, 4H)     folded bias
      whh0_ref: (H, 4H)     layer-0 recurrent weight (transposed)
      rest    : wcat_1..wcat_{L-1} each (2H, 4H) = [W_ih_l.T ; W_hh_l.T], then out_ref
      out_ref : (BP, out_w) lane-padded masked-max result
    """
    wcat_refs = rest[:num_layers - 1]
    out_ref = rest[num_layers - 1]

    # ---- layer-0 input projection (embed already folded in), hoisted over T ----
    xp0 = jnp.dot(x_ref[...], w0_ref[...],
                  preferred_element_type=jnp.float32) + b0_ref[...]      # (T*BP, 4H)

    whh0 = whh0_ref[...]                                                 # (H, 4H)
    wcat = [w[...] for w in wcat_refs]                                   # (2H, 4H)

    def lstm_cell(gates, c_prev):
        # sigmoid(x) = 0.5*(tanh(x/2)+1): keeps the divide off the VALU slot.
        # At (8,128) each tanh pass is a single EUP vreg, so the full-width
        # second pass is free (would slice to the g-quarter if B*4H grew).
        sg = 0.5 * (jnp.tanh(0.5 * gates) + 1.0)
        tg = jnp.tanh(gates)
        i_g = sg[:, 0 * H:1 * H]
        f_g = sg[:, 1 * H:2 * H]
        g_g = tg[:, 2 * H:3 * H]
        o_g = sg[:, 3 * H:4 * H]
        c_new = f_g * c_prev + i_g * g_g
        h_new = o_g * jnp.tanh(c_new)
        return h_new, c_new

    lens = len_ref[...]                                                  # (BP, 1) i32
    zeros = jnp.zeros((BP, H), jnp.float32)
    h = [zeros] * num_layers
    c = [zeros] * num_layers
    acc = jnp.full((BP, H), -jnp.inf, jnp.float32)

    # Short fixed trip count -> fully unrolled; all recurrent state stays in
    # vregs, upper layers consume the lower layer's h_t in the same step.
    for t in range(T):
        # Aligned (8,128) tile slice of the hoisted projection.
        g0 = xp0[t * BP:(t + 1) * BP, :] + jnp.dot(
            h[0], whh0, preferred_element_type=jnp.float32)
        h[0], c[0] = lstm_cell(g0, c[0])
        x_in = h[0]
        for l in range(1, num_layers):
            hin = jnp.concatenate([x_in, h[l]], axis=1)                  # (BP, 2H)
            gl = jnp.dot(hin, wcat[l - 1], preferred_element_type=jnp.float32)
            h[l], c[l] = lstm_cell(gl, c[l])
            x_in = h[l]
        # Running masked max over valid time steps of the top layer.
        valid = t < lens                                                 # (BP, 1)
        acc = jnp.maximum(acc, jnp.where(valid, x_in, -jnp.inf))

    # pad_packed_sequence zero-pads short rows up to max(length): those rows
    # include 0 as a max candidate (exact torch.max(dim=1) semantics).
    maxlen = jnp.max(lens)
    final = jnp.where(lens < maxlen, jnp.maximum(acc, 0.0), acc)         # (BP, H)
    # Lane-dense full-width store; padded columns are zeros, sliced off outside.
    out_ref[...] = jnp.concatenate(
        [final, jnp.zeros((BP, out_w - H), jnp.float32)], axis=1)


# ----------------------------- wrapper ---------------------------------------
@jax.jit
def pallas_forward(text, text_length, params):
    B, T, V = text.shape
    H = HIDDEN_DIM
    BP = B_PAD

    # Batch pad + time-major view of the raw input (tiny, cheap XLA ops; all
    # intermediates afterwards stay inside the single fused kernel).
    text_p = jnp.pad(text, ((0, BP - B), (0, 0), (0, 0)))
    x_tm = jnp.swapaxes(text_p, 0, 1).reshape(T * BP, V)
    lens = jnp.pad(text_length.astype(jnp.int32), (0, BP - B)).reshape(BP, 1)

    # Fold embed Linear into layer-0's input projection (exact same math:
    # composition of two linears; tiny one-time weight contraction).
    w_ih0_t = params["w_ih_0"].T                                  # (E, 4H)
    w0 = params["embed_w"].T @ w_ih0_t                            # (V, 4H)
    b0 = (params["embed_b"] @ w_ih0_t)[None, :]                   # (1, 4H)
    whh0 = params["w_hh_0"].T                                     # (H, 4H)

    inputs = [x_tm, lens, w0, b0, whh0]
    for l in range(1, NUM_LAYERS):
        # Stack input/recurrent weights along K so each upper-layer step is a
        # single (B,2H)@(2H,4H) matmul.
        inputs.append(jnp.concatenate(
            [params[f"w_ih_{l}"].T, params[f"w_hh_{l}"].T], axis=0))  # (2H, 4H)

    kernel = functools.partial(
        fused_lstm_kernel, T=T, BP=BP, H=H, num_layers=NUM_LAYERS, out_w=OUT_W)
    out = pl.pallas_call(
        kernel,
        out_shape=jax.ShapeDtypeStruct((BP, OUT_W), jnp.float32),
        in_specs=[pl.BlockSpec(memory_space=pltpu.MemorySpace.VMEM)
                  for _ in inputs],
        out_specs=pl.BlockSpec(memory_space=pltpu.MemorySpace.VMEM),
    )(*inputs)
    return out[:B, :H]


# ----------------------------- params ----------------------------------------
def init_params(key):
    params = {}
    k_ew, k_eb, key = jax.random.split(key, 3)
    bound_e = 1.0 / np.sqrt(VOCAB_SIZE)
    params["embed_w"] = jax.random.uniform(
        k_ew, (EMBED_SIZE, VOCAB_SIZE), jnp.float32, -bound_e, bound_e)
    params["embed_b"] = jax.random.uniform(
        k_eb, (EMBED_SIZE,), jnp.float32, -bound_e, bound_e)
    bound_h = 1.0 / np.sqrt(HIDDEN_DIM)
    for l in range(NUM_LAYERS):
        in_dim = EMBED_SIZE if l == 0 else HIDDEN_DIM
        k1, k2, key = jax.random.split(key, 3)
        params[f"w_ih_{l}"] = jax.random.uniform(
            k1, (4 * HIDDEN_DIM, in_dim), jnp.float32, -bound_h, bound_h)
        params[f"w_hh_{l}"] = jax.random.uniform(
            k2, (4 * HIDDEN_DIM, HIDDEN_DIM), jnp.float32, -bound_h, bound_h)
    return params


# ----------------------------- pure-JAX reference ----------------------------
def _sigmoid(z):
    return 1.0 / (1.0 + jnp.exp(-z))


def ref_forward(text, text_length, params):
    B, T, _ = text.shape
    H = HIDDEN_DIM
    x = text @ params["embed_w"].T + params["embed_b"]    # (B, T, E)
    h_seq = x
    for l in range(NUM_LAYERS):
        w_ih = params[f"w_ih_{l}"]
        w_hh = params[f"w_hh_{l}"]

        def step(carry, xt):
            hp, cp = carry
            gates = xt @ w_ih.T + hp @ w_hh.T
            i, f, g, o = jnp.split(gates, 4, axis=-1)
            i, f, g, o = _sigmoid(i), _sigmoid(f), jnp.tanh(g), _sigmoid(o)
            c = f * cp + i * g
            hn = o * jnp.tanh(c)
            return (hn, c), hn

        xs = jnp.swapaxes(h_seq, 0, 1)
        (_, _), hs = jax.lax.scan(
            step, (jnp.zeros((B, H)), jnp.zeros((B, H))), xs)
        h_seq = jnp.swapaxes(hs, 0, 1)                    # (B, T, H)

    lens = text_length.astype(jnp.int32)
    tt = jnp.arange(T)[None, :, None]
    valid = tt < lens[:, None, None]
    masked = jnp.where(valid, h_seq, -jnp.inf)
    m = jnp.max(masked, axis=1)
    maxlen = jnp.max(lens)
    m = jnp.where((lens < maxlen)[:, None], jnp.maximum(m, 0.0), m)
    return m


# ----------------------------- main ------------------------------------------
if __name__ == "__main__":
    key = jax.random.PRNGKey(0)
    k_text, k_params = jax.random.split(key)
    text = jax.random.normal(k_text, (BATCH, SEQ, VOCAB_SIZE), jnp.float32)
    text_length = jnp.array([SEQ, 5], dtype=jnp.int32)
    params = init_params(k_params)

    out = jax.block_until_ready(pallas_forward(text, text_length, params))
    ref = jax.block_until_ready(ref_forward(text, text_length, params))

    assert out.shape == (BATCH, HIDDEN_DIM), out.shape
    np.testing.assert_allclose(np.asarray(out), np.asarray(ref),
                               rtol=2e-3, atol=2e-3)
    print("KERNEL_OK")
</pallas_src>

<mosaic_0001>
module attributes {stable_mosaic.version = 11 : i64} {
  func.func @fused_lstm_kernel(%arg0: memref<64x16xf32, #tpu.memory_space<vmem>>, %arg1: memref<8x1xi32, #tpu.memory_space<vmem>>, %arg2: memref<16x128xf32, #tpu.memory_space<vmem>>, %arg3: memref<1x128xf32, #tpu.memory_space<vmem>>, %arg4: memref<32x128xf32, #tpu.memory_space<vmem>>, %arg5: memref<64x128xf32, #tpu.memory_space<vmem>>, %arg6: memref<8x128xf32, #tpu.memory_space<vmem>>) attributes {dimension_semantics = [], scalar_prefetch = 0 : i64, scratch_operands = 0 : i64, tpu.core_type = #tpu.core_type<tc>} {
    %c0 = arith.constant 0 : index
    %c0_0 = arith.constant 0 : index
    %0 = vector.load %arg0[%c0, %c0_0] : memref<64x16xf32, #tpu.memory_space<vmem>>, vector<64x16xf32>
    %c0_1 = arith.constant 0 : index
    %c0_2 = arith.constant 0 : index
    %1 = vector.load %arg2[%c0_1, %c0_2] : memref<16x128xf32, #tpu.memory_space<vmem>>, vector<16x128xf32>
    %cst = arith.constant dense<0.000000e+00> : vector<64x128xf32>
    %2 = tpu.matmul %0, %1, %cst {dimension_numbers = #tpu.dot_dimension_numbers<[1], [0], [0], [1], [0, 0, 1, 1], [], []>} : vector<64x16xf32>, vector<16x128xf32>, vector<64x128xf32> -> vector<64x128xf32>
    %c0_3 = arith.constant 0 : index
    %c0_4 = arith.constant 0 : index
    %3 = vector.load %arg3[%c0_3, %c0_4] : memref<1x128xf32, #tpu.memory_space<vmem>>, vector<1x128xf32>
    %4 = vector.broadcast %3 : vector<1x128xf32> to vector<64x128xf32>
    %5 = arith.addf %2, %4 : vector<64x128xf32>
    %c0_5 = arith.constant 0 : index
    %c0_6 = arith.constant 0 : index
    %6 = vector.load %arg4[%c0_5, %c0_6] : memref<32x128xf32, #tpu.memory_space<vmem>>, vector<32x128xf32>
    %c0_7 = arith.constant 0 : index
    %c0_8 = arith.constant 0 : index
    %7 = vector.load %arg5[%c0_7, %c0_8] : memref<64x128xf32, #tpu.memory_space<vmem>>, vector<64x128xf32>
    %c0_9 = arith.constant 0 : index
    %c0_10 = arith.constant 0 : index
    %8 = vector.load %arg1[%c0_9, %c0_10] : memref<8x1xi32, #tpu.memory_space<vmem>>, vector<8x1xi32>
    %cst_11 = arith.constant 0.000000e+00 : f32
    %9 = vector.broadcast %cst_11 : f32 to vector<8x32xf32>
    %cst_12 = arith.constant 0xFF800000 : f32
    %10 = vector.broadcast %cst_12 : f32 to vector<8x32xf32>
    %11 = vector.extract_strided_slice %5 {offsets = [0, 0], sizes = [8, 128], strides = [1, 1]} : vector<64x128xf32> to vector<8x128xf32>
    %cst_13 = arith.constant dense<0.000000e+00> : vector<8x128xf32>
    %12 = tpu.matmul %9, %6, %cst_13 {dimension_numbers = #tpu.dot_dimension_numbers<[1], [0], [0], [1], [0, 0, 1, 1], [], []>} : vector<8x32xf32>, vector<32x128xf32>, vector<8x128xf32> -> vector<8x128xf32>
    %13 = arith.addf %11, %12 : vector<8x128xf32>
    %cst_14 = arith.constant 5.000000e-01 : f32
    %14 = vector.broadcast %cst_14 : f32 to vector<8x128xf32>
    %15 = arith.mulf %14, %13 : vector<8x128xf32>
    %16 = math.tanh %15 : vector<8x128xf32>
    %cst_15 = arith.constant 1.000000e+00 : f32
    %17 = vector.broadcast %cst_15 : f32 to vector<8x128xf32>
    %18 = arith.addf %16, %17 : vector<8x128xf32>
    %cst_16 = arith.constant 5.000000e-01 : f32
    %19 = vector.broadcast %cst_16 : f32 to vector<8x128xf32>
    %20 = arith.mulf %19, %18 : vector<8x128xf32>
    %21 = math.tanh %13 : vector<8x128xf32>
    %22 = vector.extract_strided_slice %20 {offsets = [0, 0], sizes = [8, 32], strides = [1, 1]} : vector<8x128xf32> to vector<8x32xf32>
    %23 = vector.extract_strided_slice %20 {offsets = [0, 32], sizes = [8, 32], strides = [1, 1]} : vector<8x128xf32> to vector<8x32xf32>
    %24 = vector.extract_strided_slice %21 {offsets = [0, 64], sizes = [8, 32], strides = [1, 1]} : vector<8x128xf32> to vector<8x32xf32>
    %25 = vector.extract_strided_slice %20 {offsets = [0, 96], sizes = [8, 32], strides = [1, 1]} : vector<8x128xf32> to vector<8x32xf32>
    %26 = arith.mulf %23, %9 : vector<8x32xf32>
    %27 = arith.mulf %22, %24 : vector<8x32xf32>
    %28 = arith.addf %26, %27 : vector<8x32xf32>
    %29 = math.tanh %28 : vector<8x32xf32>
    %30 = arith.mulf %25, %29 : vector<8x32xf32>
    %31 = tpu.concatenate %30, %9 in 1 : vector<8x32xf32>, vector<8x32xf32> -> vector<8x64xf32>
    %cst_17 = arith.constant dense<0.000000e+00> : vector<8x128xf32>
    %32 = tpu.matmul %31, %7, %cst_17 {dimension_numbers = #tpu.dot_dimension_numbers<[1], [0], [0], [1], [0, 0, 1, 1], [], []>} : vector<8x64xf32>, vector<64x128xf32>, vector<8x128xf32> -> vector<8x128xf32>
    %cst_18 = arith.constant 5.000000e-01 : f32
    %33 = vector.broadcast %cst_18 : f32 to vector<8x128xf32>
    %34 = arith.mulf %33, %32 : vector<8x128xf32>
    %35 = math.tanh %34 : vector<8x128xf32>
    %cst_19 = arith.constant 1.000000e+00 : f32
    %36 = vector.broadcast %cst_19 : f32 to vector<8x128xf32>
    %37 = arith.addf %35, %36 : vector<8x128xf32>
    %cst_20 = arith.constant 5.000000e-01 : f32
    %38 = vector.broadcast %cst_20 : f32 to vector<8x128xf32>
    %39 = arith.mulf %38, %37 : vector<8x128xf32>
    %40 = math.tanh %32 : vector<8x128xf32>
    %41 = vector.extract_strided_slice %39 {offsets = [0, 0], sizes = [8, 32], strides = [1, 1]} : vector<8x128xf32> to vector<8x32xf32>
    %42 = vector.extract_strided_slice %39 {offsets = [0, 32], sizes = [8, 32], strides = [1, 1]} : vector<8x128xf32> to vector<8x32xf32>
    %43 = vector.extract_strided_slice %40 {offsets = [0, 64], sizes = [8, 32], strides = [1, 1]} : vector<8x128xf32> to vector<8x32xf32>
    %44 = vector.extract_strided_slice %39 {offsets = [0, 96], sizes = [8, 32], strides = [1, 1]} : vector<8x128xf32> to vector<8x32xf32>
    %45 = arith.mulf %42, %9 : vector<8x32xf32>
    %46 = arith.mulf %41, %43 : vector<8x32xf32>
    %47 = arith.addf %45, %46 : vector<8x32xf32>
    %48 = math.tanh %47 : vector<8x32xf32>
    %49 = arith.mulf %44, %48 : vector<8x32xf32>
    %c0_i32 = arith.constant 0 : i32
    %50 = vector.broadcast %c0_i32 : i32 to vector<8x1xi32>
    %51 = arith.cmpi sgt, %8, %50 : vector<8x1xi32>
    %cst_21 = arith.constant 0xFF800000 : f32
    %52 = vector.shape_cast %51 : vector<8x1xi1> to vector<8x1xi1>
    %53 = vector.broadcast %52 : vector<8x1xi1> to vector<8x32xi1>
    %54 = vector.broadcast %cst_21 : f32 to vector<8x32xf32>
    %55 = arith.select %53, %49, %54 : vector<8x32xi1>, vector<8x32xf32>
    %56 = arith.maximumf %10, %55 : vector<8x32xf32>
    %57 = vector.extract_strided_slice %5 {offsets = [8, 0], sizes = [8, 128], strides = [1, 1]} : vector<64x128xf32> to vector<8x128xf32>
    %cst_22 = arith.constant dense<0.000000e+00> : vector<8x128xf32>
    %58 = tpu.matmul %30, %6, %cst_22 {dimension_numbers = #tpu.dot_dimension_numbers<[1], [0], [0], [1], [0, 0, 1, 1], [], []>} : vector<8x32xf32>, vector<32x128xf32>, vector<8x128xf32> -> vector<8x128xf32>
    %59 = arith.addf %57, %58 : vector<8x128xf32>
    %cst_23 = arith.constant 5.000000e-01 : f32
    %60 = vector.broadcast %cst_23 : f32 to vector<8x128xf32>
    %61 = arith.mulf %60, %59 : vector<8x128xf32>
    %62 = math.tanh %61 : vector<8x128xf32>
    %cst_24 = arith.constant 1.000000e+00 : f32
    %63 = vector.broadcast %cst_24 : f32 to vector<8x128xf32>
    %64 = arith.addf %62, %63 : vector<8x128xf32>
    %cst_25 = arith.constant 5.000000e-01 : f32
    %65 = vector.broadcast %cst_25 : f32 to vector<8x128xf32>
    %66 = arith.mulf %65, %64 : vector<8x128xf32>
    %67 = math.tanh %59 : vector<8x128xf32>
    %68 = vector.extract_strided_slice %66 {offsets = [0, 0], sizes = [8, 32], strides = [1, 1]} : vector<8x128xf32> to vector<8x32xf32>
    %69 = vector.extract_strided_slice %66 {offsets = [0, 32], sizes = [8, 32], strides = [1, 1]} : vector<8x128xf32> to vector<8x32xf32>
    %70 = vector.extract_strided_slice %67 {offsets = [0, 64], sizes = [8, 32], strides = [1, 1]} : vector<8x128xf32> to vector<8x32xf32>
    %71 = vector.extract_strided_slice %66 {offsets = [0, 96], sizes = [8, 32], strides = [1, 1]} : vector<8x128xf32> to vector<8x32xf32>
    %72 = arith.mulf %69, %28 : vector<8x32xf32>
    %73 = arith.mulf %68, %70 : vector<8x32xf32>
    %74 = arith.addf %72, %73 : vector<8x32xf32>
    %75 = math.tanh %74 : vector<8x32xf32>
    %76 = arith.mulf %71, %75 : vector<8x32xf32>
    %77 = tpu.concatenate %76, %49 in 1 : vector<8x32xf32>, vector<8x32xf32> -> vector<8x64xf32>
    %cst_26 = arith.constant dense<0.000000e+00> : vector<8x128xf32>
    %78 = tpu.matmul %77, %7, %cst_26 {dimension_numbers = #tpu.dot_dimension_numbers<[1], [0], [0], [1], [0, 0, 1, 1], [], []>} : vector<8x64xf32>, vector<64x128xf32>, vector<8x128xf32> -> vector<8x128xf32>
    %cst_27 = arith.constant 5.000000e-01 : f32
    %79 = vector.broadcast %cst_27 : f32 to vector<8x128xf32>
    %80 = arith.mulf %79, %78 : vector<8x128xf32>
    %81 = math.tanh %80 : vector<8x128xf32>
    %cst_28 = arith.constant 1.000000e+00 : f32
    %82 = vector.broadcast %cst_28 : f32 to vector<8x128xf32>
    %83 = arith.addf %81, %82 : vector<8x128xf32>
    %cst_29 = arith.constant 5.000000e-01 : f32
    %84 = vector.broadcast %cst_29 : f32 to vector<8x128xf32>
    %85 = arith.mulf %84, %83 : vector<8x128xf32>
    %86 = math.tanh %78 : vector<8x128xf32>
    %87 = vector.extract_strided_slice %85 {offsets = [0, 0], sizes = [8, 32], strides = [1, 1]} : vector<8x128xf32> to vector<8x32xf32>
    %88 = vector.extract_strided_slice %85 {offsets = [0, 32], sizes = [8, 32], strides = [1, 1]} : vector<8x128xf32> to vector<8x32xf32>
    %89 = vector.extract_strided_slice %86 {offsets = [0, 64], sizes = [8, 32], strides = [1, 1]} : vector<8x128xf32> to vector<8x32xf32>
    %90 = vector.extract_strided_slice %85 {offsets = [0, 96], sizes = [8, 32], strides = [1, 1]} : vector<8x128xf32> to vector<8x32xf32>
    %91 = arith.mulf %88, %47 : vector<8x32xf32>
    %92 = arith.mulf %87, %89 : vector<8x32xf32>
    %93 = arith.addf %91, %92 : vector<8x32xf32>
    %94 = math.tanh %93 : vector<8x32xf32>
    %95 = arith.mulf %90, %94 : vector<8x32xf32>
    %c1_i32 = arith.constant 1 : i32
    %96 = vector.broadcast %c1_i32 : i32 to vector<8x1xi32>
    %97 = arith.cmpi sgt, %8, %96 : vector<8x1xi32>
    %cst_30 = arith.constant 0xFF800000 : f32
    %98 = vector.shape_cast %97 : vector<8x1xi1> to vector<8x1xi1>
    %99 = vector.broadcast %98 : vector<8x1xi1> to vector<8x32xi1>
    %100 = vector.broadcast %cst_30 : f32 to vector<8x32xf32>
    %101 = arith.select %99, %95, %100 : vector<8x32xi1>, vector<8x32xf32>
    %102 = arith.maximumf %56, %101 : vector<8x32xf32>
    %103 = vector.extract_strided_slice %5 {offsets = [16, 0], sizes = [8, 128], strides = [1, 1]} : vector<64x128xf32> to vector<8x128xf32>
    %cst_31 = arith.constant dense<0.000000e+00> : vector<8x128xf32>
    %104 = tpu.matmul %76, %6, %cst_31 {dimension_numbers = #tpu.dot_dimension_numbers<[1], [0], [0], [1], [0, 0, 1, 1], [], []>} : vector<8x32xf32>, vector<32x128xf32>, vector<8x128xf32> -> vector<8x128xf32>
    %105 = arith.addf %103, %104 : vector<8x128xf32>
    %cst_32 = arith.constant 5.000000e-01 : f32
    %106 = vector.broadcast %cst_32 : f32 to vector<8x128xf32>
    %107 = arith.mulf %106, %105 : vector<8x128xf32>
    %108 = math.tanh %107 : vector<8x128xf32>
    %cst_33 = arith.constant 1.000000e+00 : f32
    %109 = vector.broadcast %cst_33 : f32 to vector<8x128xf32>
    %110 = arith.addf %108, %109 : vector<8x128xf32>
    %cst_34 = arith.constant 5.000000e-01 : f32
    %111 = vector.broadcast %cst_34 : f32 to vector<8x128xf32>
    %112 = arith.mulf %111, %110 : vector<8x128xf32>
    %113 = math.tanh %105 : vector<8x128xf32>
    %114 = vector.extract_strided_slice %112 {offsets = [0, 0], sizes = [8, 32], strides = [1, 1]} : vector<8x128xf32> to vector<8x32xf32>
    %115 = vector.extract_strided_slice %112 {offsets = [0, 32], sizes = [8, 32], strides = [1, 1]} : vector<8x128xf32> to vector<8x32xf32>
    %116 = vector.extract_strided_slice %113 {offsets = [0, 64], sizes = [8, 32], strides = [1, 1]} : vector<8x128xf32> to vector<8x32xf32>
    %117 = vector.extract_strided_slice %112 {offsets = [0, 96], sizes = [8, 32], strides = [1, 1]} : vector<8x128xf32> to vector<8x32xf32>
    %118 = arith.mulf %115, %74 : vector<8x32xf32>
    %119 = arith.mulf %114, %116 : vector<8x32xf32>
    %120 = arith.addf %118, %119 : vector<8x32xf32>
    %121 = math.tanh %120 : vector<8x32xf32>
    %122 = arith.mulf %117, %121 : vector<8x32xf32>
    %123 = tpu.concatenate %122, %95 in 1 : vector<8x32xf32>, vector<8x32xf32> -> vector<8x64xf32>
    %cst_35 = arith.constant dense<0.000000e+00> : vector<8x128xf32>
    %124 = tpu.matmul %123, %7, %cst_35 {dimension_numbers = #tpu.dot_dimension_numbers<[1], [0], [0], [1], [0, 0, 1, 1], [], []>} : vector<8x64xf32>, vector<64x128xf32>, vector<8x128xf32> -> vector<8x128xf32>
    %cst_36 = arith.constant 5.000000e-01 : f32
    %125 = vector.broadcast %cst_36 : f32 to vector<8x128xf32>
    %126 = arith.mulf %125, %124 : vector<8x128xf32>
    %127 = math.tanh %126 : vector<8x128xf32>
    %cst_37 = arith.constant 1.000000e+00 : f32
    %128 = vector.broadcast %cst_37 : f32 to vector<8x128xf32>
    %129 = arith.addf %127, %128 : vector<8x128xf32>
    %cst_38 = arith.constant 5.000000e-01 : f32
    %130 = vector.broadcast %cst_38 : f32 to vector<8x128xf32>
    %131 = arith.mulf %130, %129 : vector<8x128xf32>
    %132 = math.tanh %124 : vector<8x128xf32>
    %133 = vector.extract_strided_slice %131 {offsets = [0, 0], sizes = [8, 32], strides = [1, 1]} : vector<8x128xf32> to vector<8x32xf32>
    %134 = vector.extract_strided_slice %131 {offsets = [0, 32], sizes = [8, 32], strides = [1, 1]} : vector<8x128xf32> to vector<8x32xf32>
    %135 = vector.extract_strided_slice %132 {offsets = [0, 64], sizes = [8, 32], strides = [1, 1]} : vector<8x128xf32> to vector<8x32xf32>
    %136 = vector.extract_strided_slice %131 {offsets = [0, 96], sizes = [8, 32], strides = [1, 1]} : vector<8x128xf32> to vector<8x32xf32>
    %137 = arith.mulf %134, %93 : vector<8x32xf32>
    %138 = arith.mulf %133, %135 : vector<8x32xf32>
    %139 = arith.addf %137, %138 : vector<8x32xf32>
    %140 = math.tanh %139 : vector<8x32xf32>
    %141 = arith.mulf %136, %140 : vector<8x32xf32>
    %c2_i32 = arith.constant 2 : i32
    %142 = vector.broadcast %c2_i32 : i32 to vector<8x1xi32>
    %143 = arith.cmpi sgt, %8, %142 : vector<8x1xi32>
    %cst_39 = arith.constant 0xFF800000 : f32
    %144 = vector.shape_cast %143 : vector<8x1xi1> to vector<8x1xi1>
    %145 = vector.broadcast %144 : vector<8x1xi1> to vector<8x32xi1>
    %146 = vector.broadcast %cst_39 : f32 to vector<8x32xf32>
    %147 = arith.select %145, %141, %146 : vector<8x32xi1>, vector<8x32xf32>
    %148 = arith.maximumf %102, %147 : vector<8x32xf32>
    %149 = vector.extract_strided_slice %5 {offsets = [24, 0], sizes = [8, 128], strides = [1, 1]} : vector<64x128xf32> to vector<8x128xf32>
    %cst_40 = arith.constant dense<0.000000e+00> : vector<8x128xf32>
    %150 = tpu.matmul %122, %6, %cst_40 {dimension_numbers = #tpu.dot_dimension_numbers<[1], [0], [0], [1], [0, 0, 1, 1], [], []>} : vector<8x32xf32>, vector<32x128xf32>, vector<8x128xf32> -> vector<8x128xf32>
    %151 = arith.addf %149, %150 : vector<8x128xf32>
    %cst_41 = arith.constant 5.000000e-01 : f32
    %152 = vector.broadcast %cst_41 : f32 to vector<8x128xf32>
    %153 = arith.mulf %152, %151 : vector<8x128xf32>
    %154 = math.tanh %153 : vector<8x128xf32>
    %cst_42 = arith.constant 1.000000e+00 : f32
    %155 = vector.broadcast %cst_42 : f32 to vector<8x128xf32>
    %156 = arith.addf %154, %155 : vector<8x128xf32>
    %cst_43 = arith.constant 5.000000e-01 : f32
    %157 = vector.broadcast %cst_43 : f32 to vector<8x128xf32>
    %158 = arith.mulf %157, %156 : vector<8x128xf32>
    %159 = math.tanh %151 : vector<8x128xf32>
    %160 = vector.extract_strided_slice %158 {offsets = [0, 0], sizes = [8, 32], strides = [1, 1]} : vector<8x128xf32> to vector<8x32xf32>
    %161 = vector.extract_strided_slice %158 {offsets = [0, 32], sizes = [8, 32], strides = [1, 1]} : vector<8x128xf32> to vector<8x32xf32>
    %162 = vector.extract_strided_slice %159 {offsets = [0, 64], sizes = [8, 32], strides = [1, 1]} : vector<8x128xf32> to vector<8x32xf32>
    %163 = vector.extract_strided_slice %158 {offsets = [0, 96], sizes = [8, 32], strides = [1, 1]} : vector<8x128xf32> to vector<8x32xf32>
    %164 = arith.mulf %161, %120 : vector<8x32xf32>
    %165 = arith.mulf %160, %162 : vector<8x32xf32>
    %166 = arith.addf %164, %165 : vector<8x32xf32>
    %167 = math.tanh %166 : vector<8x32xf32>
    %168 = arith.mulf %163, %167 : vector<8x32xf32>
    %169 = tpu.concatenate %168, %141 in 1 : vector<8x32xf32>, vector<8x32xf32> -> vector<8x64xf32>
    %cst_44 = arith.constant dense<0.000000e+00> : vector<8x128xf32>
    %170 = tpu.matmul %169, %7, %cst_44 {dimension_numbers = #tpu.dot_dimension_numbers<[1], [0], [0], [1], [0, 0, 1, 1], [], []>} : vector<8x64xf32>, vector<64x128xf32>, vector<8x128xf32> -> vector<8x128xf32>
    %cst_45 = arith.constant 5.000000e-01 : f32
    %171 = vector.broadcast %cst_45 : f32 to vector<8x128xf32>
    %172 = arith.mulf %171, %170 : vector<8x128xf32>
    %173 = math.tanh %172 : vector<8x128xf32>
    %cst_46 = arith.constant 1.000000e+00 : f32
    %174 = vector.broadcast %cst_46 : f32 to vector<8x128xf32>
    %175 = arith.addf %173, %174 : vector<8x128xf32>
    %cst_47 = arith.constant 5.000000e-01 : f32
    %176 = vector.broadcast %cst_47 : f32 to vector<8x128xf32>
    %177 = arith.mulf %176, %175 : vector<8x128xf32>
    %178 = math.tanh %170 : vector<8x128xf32>
    %179 = vector.extract_strided_slice %177 {offsets = [0, 0], sizes = [8, 32], strides = [1, 1]} : vector<8x128xf32> to vector<8x32xf32>
    %180 = vector.extract_strided_slice %177 {offsets = [0, 32], sizes = [8, 32], strides = [1, 1]} : vector<8x128xf32> to vector<8x32xf32>
    %181 = vector.extract_strided_slice %178 {offsets = [0, 64], sizes = [8, 32], strides = [1, 1]} : vector<8x128xf32> to vector<8x32xf32>
    %182 = vector.extract_strided_slice %177 {offsets = [0, 96], sizes = [8, 32], strides = [1, 1]} : vector<8x128xf32> to vector<8x32xf32>
    %183 = arith.mulf %180, %139 : vector<8x32xf32>
    %184 = arith.mulf %179, %181 : vector<8x32xf32>
    %185 = arith.addf %183, %184 : vector<8x32xf32>
    %186 = math.tanh %185 : vector<8x32xf32>
    %187 = arith.mulf %182, %186 : vector<8x32xf32>
    %c3_i32 = arith.constant 3 : i32
    %188 = vector.broadcast %c3_i32 : i32 to vector<8x1xi32>
    %189 = arith.cmpi sgt, %8, %188 : vector<8x1xi32>
    %cst_48 = arith.constant 0xFF800000 : f32
    %190 = vector.shape_cast %189 : vector<8x1xi1> to vector<8x1xi1>
    %191 = vector.broadcast %190 : vector<8x1xi1> to vector<8x32xi1>
    %192 = vector.broadcast %cst_48 : f32 to vector<8x32xf32>
    %193 = arith.select %191, %187, %192 : vector<8x32xi1>, vector<8x32xf32>
    %194 = arith.maximumf %148, %193 : vector<8x32xf32>
    %195 = vector.extract_strided_slice %5 {offsets = [32, 0], sizes = [8, 128], strides = [1, 1]} : vector<64x128xf32> to vector<8x128xf32>
    %cst_49 = arith.constant dense<0.000000e+00> : vector<8x128xf32>
    %196 = tpu.matmul %168, %6, %cst_49 {dimension_numbers = #tpu.dot_dimension_numbers<[1], [0], [0], [1], [0, 0, 1, 1], [], []>} : vector<8x32xf32>, vector<32x128xf32>, vector<8x128xf32> -> vector<8x128xf32>
    %197 = arith.addf %195, %196 : vector<8x128xf32>
    %cst_50 = arith.constant 5.000000e-01 : f32
    %198 = vector.broadcast %cst_50 : f32 to vector<8x128xf32>
    %199 = arith.mulf %198, %197 : vector<8x128xf32>
    %200 = math.tanh %199 : vector<8x128xf32>
    %cst_51 = arith.constant 1.000000e+00 : f32
    %201 = vector.broadcast %cst_51 : f32 to vector<8x128xf32>
    %202 = arith.addf %200, %201 : vector<8x128xf32>
    %cst_52 = arith.constant 5.000000e-01 : f32
    %203 = vector.broadcast %cst_52 : f32 to vector<8x128xf32>
    %204 = arith.mulf %203, %202 : vector<8x128xf32>
    %205 = math.tanh %197 : vector<8x128xf32>
    %206 = vector.extract_strided_slice %204 {offsets = [0, 0], sizes = [8, 32], strides = [1, 1]} : vector<8x128xf32> to vector<8x32xf32>
    %207 = vector.extract_strided_slice %204 {offsets = [0, 32], sizes = [8, 32], strides = [1, 1]} : vector<8x128xf32> to vector<8x32xf32>
    %208 = vector.extract_strided_slice %205 {offsets = [0, 64], sizes = [8, 32], strides = [1, 1]} : vector<8x128xf32> to vector<8x32xf32>
    %209 = vector.extract_strided_slice %204 {offsets = [0, 96], sizes = [8, 32], strides = [1, 1]} : vector<8x128xf32> to vector<8x32xf32>
    %210 = arith.mulf %207, %166 : vector<8x32xf32>
    %211 = arith.mulf %206, %208 : vector<8x32xf32>
    %212 = arith.addf %210, %211 : vector<8x32xf32>
    %213 = math.tanh %212 : vector<8x32xf32>
    %214 = arith.mulf %209, %213 : vector<8x32xf32>
    %215 = tpu.concatenate %214, %187 in 1 : vector<8x32xf32>, vector<8x32xf32> -> vector<8x64xf32>
    %cst_53 = arith.constant dense<0.000000e+00> : vector<8x128xf32>
    %216 = tpu.matmul %215, %7, %cst_53 {dimension_numbers = #tpu.dot_dimension_numbers<[1], [0], [0], [1], [0, 0, 1, 1], [], []>} : vector<8x64xf32>, vector<64x128xf32>, vector<8x128xf32> -> vector<8x128xf32>
    %cst_54 = arith.constant 5.000000e-01 : f32
    %217 = vector.broadcast %cst_54 : f32 to vector<8x128xf32>
    %218 = arith.mulf %217, %216 : vector<8x128xf32>
    %219 = math.tanh %218 : vector<8x128xf32>
    %cst_55 = arith.constant 1.000000e+00 : f32
    %220 = vector.broadcast %cst_55 : f32 to vector<8x128xf32>
    %221 = arith.addf %219, %220 : vector<8x128xf32>
    %cst_56 = arith.constant 5.000000e-01 : f32
    %222 = vector.broadcast %cst_56 : f32 to vector<8x128xf32>
    %223 = arith.mulf %222, %221 : vector<8x128xf32>
    %224 = math.tanh %216 : vector<8x128xf32>
    %225 = vector.extract_strided_slice %223 {offsets = [0, 0], sizes = [8, 32], strides = [1, 1]} : vector<8x128xf32> to vector<8x32xf32>
    %226 = vector.extract_strided_slice %223 {offsets = [0, 32], sizes = [8, 32], strides = [1, 1]} : vector<8x128xf32> to vector<8x32xf32>
    %227 = vector.extract_strided_slice %224 {offsets = [0, 64], sizes = [8, 32], strides = [1, 1]} : vector<8x128xf32> to vector<8x32xf32>
    %228 = vector.extract_strided_slice %223 {offsets = [0, 96], sizes = [8, 32], strides = [1, 1]} : vector<8x128xf32> to vector<8x32xf32>
    %229 = arith.mulf %226, %185 : vector<8x32xf32>
    %230 = arith.mulf %225, %227 : vector<8x32xf32>
    %231 = arith.addf %229, %230 : vector<8x32xf32>
    %232 = math.tanh %231 : vector<8x32xf32>
    %233 = arith.mulf %228, %232 : vector<8x32xf32>
    %c4_i32 = arith.constant 4 : i32
    %234 = vector.broadcast %c4_i32 : i32 to vector<8x1xi32>
    %235 = arith.cmpi sgt, %8, %234 : vector<8x1xi32>
    %cst_57 = arith.constant 0xFF800000 : f32
    %236 = vector.shape_cast %235 : vector<8x1xi1> to vector<8x1xi1>
    %237 = vector.broadcast %236 : vector<8x1xi1> to vector<8x32xi1>
    %238 = vector.broadcast %cst_57 : f32 to vector<8x32xf32>
    %239 = arith.select %237, %233, %238 : vector<8x32xi1>, vector<8x32xf32>
    %240 = arith.maximumf %194, %239 : vector<8x32xf32>
    %241 = vector.extract_strided_slice %5 {offsets = [40, 0], sizes = [8, 128], strides = [1, 1]} : vector<64x128xf32> to vector<8x128xf32>
    %cst_58 = arith.constant dense<0.000000e+00> : vector<8x128xf32>
    %242 = tpu.matmul %214, %6, %cst_58 {dimension_numbers = #tpu.dot_dimension_numbers<[1], [0], [0], [1], [0, 0, 1, 1], [], []>} : vector<8x32xf32>, vector<32x128xf32>, vector<8x128xf32> -> vector<8x128xf32>
    %243 = arith.addf %241, %242 : vector<8x128xf32>
    %cst_59 = arith.constant 5.000000e-01 : f32
    %244 = vector.broadcast %cst_59 : f32 to vector<8x128xf32>
    %245 = arith.mulf %244, %243 : vector<8x128xf32>
    %246 = math.tanh %245 : vector<8x128xf32>
    %cst_60 = arith.constant 1.000000e+00 : f32
    %247 = vector.broadcast %cst_60 : f32 to vector<8x128xf32>
    %248 = arith.addf %246, %247 : vector<8x128xf32>
    %cst_61 = arith.constant 5.000000e-01 : f32
    %249 = vector.broadcast %cst_61 : f32 to vector<8x128xf32>
    %250 = arith.mulf %249, %248 : vector<8x128xf32>
    %251 = math.tanh %243 : vector<8x128xf32>
    %252 = vector.extract_strided_slice %250 {offsets = [0, 0], sizes = [8, 32], strides = [1, 1]} : vector<8x128xf32> to vector<8x32xf32>
    %253 = vector.extract_strided_slice %250 {offsets = [0, 32], sizes = [8, 32], strides = [1, 1]} : vector<8x128xf32> to vector<8x32xf32>
    %254 = vector.extract_strided_slice %251 {offsets = [0, 64], sizes = [8, 32], strides = [1, 1]} : vector<8x128xf32> to vector<8x32xf32>
    %255 = vector.extract_strided_slice %250 {offsets = [0, 96], sizes = [8, 32], strides = [1, 1]} : vector<8x128xf32> to vector<8x32xf32>
    %256 = arith.mulf %253, %212 : vector<8x32xf32>
    %257 = arith.mulf %252, %254 : vector<8x32xf32>
    %258 = arith.addf %256, %257 : vector<8x32xf32>
    %259 = math.tanh %258 : vector<8x32xf32>
    %260 = arith.mulf %255, %259 : vector<8x32xf32>
    %261 = tpu.concatenate %260, %233 in 1 : vector<8x32xf32>, vector<8x32xf32> -> vector<8x64xf32>
    %cst_62 = arith.constant dense<0.000000e+00> : vector<8x128xf32>
    %262 = tpu.matmul %261, %7, %cst_62 {dimension_numbers = #tpu.dot_dimension_numbers<[1], [0], [0], [1], [0, 0, 1, 1], [], []>} : vector<8x64xf32>, vector<64x128xf32>, vector<8x128xf32> -> vector<8x128xf32>
    %cst_63 = arith.constant 5.000000e-01 : f32
    %263 = vector.broadcast %cst_63 : f32 to vector<8x128xf32>
    %264 = arith.mulf %263, %262 : vector<8x128xf32>
    %265 = math.tanh %264 : vector<8x128xf32>
    %cst_64 = arith.constant 1.000000e+00 : f32
    %266 = vector.broadcast %cst_64 : f32 to vector<8x128xf32>
    %267 = arith.addf %265, %266 : vector<8x128xf32>
    %cst_65 = arith.constant 5.000000e-01 : f32
    %268 = vector.broadcast %cst_65 : f32 to vector<8x128xf32>
    %269 = arith.mulf %268, %267 : vector<8x128xf32>
    %270 = math.tanh %262 : vector<8x128xf32>
    %271 = vector.extract_strided_slice %269 {offsets = [0, 0], sizes = [8, 32], strides = [1, 1]} : vector<8x128xf32> to vector<8x32xf32>
    %272 = vector.extract_strided_slice %269 {offsets = [0, 32], sizes = [8, 32], strides = [1, 1]} : vector<8x128xf32> to vector<8x32xf32>
    %273 = vector.extract_strided_slice %270 {offsets = [0, 64], sizes = [8, 32], strides = [1, 1]} : vector<8x128xf32> to vector<8x32xf32>
    %274 = vector.extract_strided_slice %269 {offsets = [0, 96], sizes = [8, 32], strides = [1, 1]} : vector<8x128xf32> to vector<8x32xf32>
    %275 = arith.mulf %272, %231 : vector<8x32xf32>
    %276 = arith.mulf %271, %273 : vector<8x32xf32>
    %277 = arith.addf %275, %276 : vector<8x32xf32>
    %278 = math.tanh %277 : vector<8x32xf32>
    %279 = arith.mulf %274, %278 : vector<8x32xf32>
    %c5_i32 = arith.constant 5 : i32
    %280 = vector.broadcast %c5_i32 : i32 to vector<8x1xi32>
    %281 = arith.cmpi sgt, %8, %280 : vector<8x1xi32>
    %cst_66 = arith.constant 0xFF800000 : f32
    %282 = vector.shape_cast %281 : vector<8x1xi1> to vector<8x1xi1>
    %283 = vector.broadcast %282 : vector<8x1xi1> to vector<8x32xi1>
    %284 = vector.broadcast %cst_66 : f32 to vector<8x32xf32>
    %285 = arith.select %283, %279, %284 : vector<8x32xi1>, vector<8x32xf32>
    %286 = arith.maximumf %240, %285 : vector<8x32xf32>
    %287 = vector.extract_strided_slice %5 {offsets = [48, 0], sizes = [8, 128], strides = [1, 1]} : vector<64x128xf32> to vector<8x128xf32>
    %cst_67 = arith.constant dense<0.000000e+00> : vector<8x128xf32>
    %288 = tpu.matmul %260, %6, %cst_67 {dimension_numbers = #tpu.dot_dimension_numbers<[1], [0], [0], [1], [0, 0, 1, 1], [], []>} : vector<8x32xf32>, vector<32x128xf32>, vector<8x128xf32> -> vector<8x128xf32>
    %289 = arith.addf %287, %288 : vector<8x128xf32>
    %cst_68 = arith.constant 5.000000e-01 : f32
    %290 = vector.broadcast %cst_68 : f32 to vector<8x128xf32>
    %291 = arith.mulf %290, %289 : vector<8x128xf32>
    %292 = math.tanh %291 : vector<8x128xf32>
    %cst_69 = arith.constant 1.000000e+00 : f32
    %293 = vector.broadcast %cst_69 : f32 to vector<8x128xf32>
    %294 = arith.addf %292, %293 : vector<8x128xf32>
    %cst_70 = arith.constant 5.000000e-01 : f32
    %295 = vector.broadcast %cst_70 : f32 to vector<8x128xf32>
    %296 = arith.mulf %295, %294 : vector<8x128xf32>
    %297 = math.tanh %289 : vector<8x128xf32>
    %298 = vector.extract_strided_slice %296 {offsets = [0, 0], sizes = [8, 32], strides = [1, 1]} : vector<8x128xf32> to vector<8x32xf32>
    %299 = vector.extract_strided_slice %296 {offsets = [0, 32], sizes = [8, 32], strides = [1, 1]} : vector<8x128xf32> to vector<8x32xf32>
    %300 = vector.extract_strided_slice %297 {offsets = [0, 64], sizes = [8, 32], strides = [1, 1]} : vector<8x128xf32> to vector<8x32xf32>
    %301 = vector.extract_strided_slice %296 {offsets = [0, 96], sizes = [8, 32], strides = [1, 1]} : vector<8x128xf32> to vector<8x32xf32>
    %302 = arith.mulf %299, %258 : vector<8x32xf32>
    %303 = arith.mulf %298, %300 : vector<8x32xf32>
    %304 = arith.addf %302, %303 : vector<8x32xf32>
    %305 = math.tanh %304 : vector<8x32xf32>
    %306 = arith.mulf %301, %305 : vector<8x32xf32>
    %307 = tpu.concatenate %306, %279 in 1 : vector<8x32xf32>, vector<8x32xf32> -> vector<8x64xf32>
    %cst_71 = arith.constant dense<0.000000e+00> : vector<8x128xf32>
    %308 = tpu.matmul %307, %7, %cst_71 {dimension_numbers = #tpu.dot_dimension_numbers<[1], [0], [0], [1], [0, 0, 1, 1], [], []>} : vector<8x64xf32>, vector<64x128xf32>, vector<8x128xf32> -> vector<8x128xf32>
    %cst_72 = arith.constant 5.000000e-01 : f32
    %309 = vector.broadcast %cst_72 : f32 to vector<8x128xf32>
    %310 = arith.mulf %309, %308 : vector<8x128xf32>
    %311 = math.tanh %310 : vector<8x128xf32>
    %cst_73 = arith.constant 1.000000e+00 : f32
    %312 = vector.broadcast %cst_73 : f32 to vector<8x128xf32>
    %313 = arith.addf %311, %312 : vector<8x128xf32>
    %cst_74 = arith.constant 5.000000e-01 : f32
    %314 = vector.broadcast %cst_74 : f32 to vector<8x128xf32>
    %315 = arith.mulf %314, %313 : vector<8x128xf32>
    %316 = math.tanh %308 : vector<8x128xf32>
    %317 = vector.extract_strided_slice %315 {offsets = [0, 0], sizes = [8, 32], strides = [1, 1]} : vector<8x128xf32> to vector<8x32xf32>
    %318 = vector.extract_strided_slice %315 {offsets = [0, 32], sizes = [8, 32], strides = [1, 1]} : vector<8x128xf32> to vector<8x32xf32>
    %319 = vector.extract_strided_slice %316 {offsets = [0, 64], sizes = [8, 32], strides = [1, 1]} : vector<8x128xf32> to vector<8x32xf32>
    %320 = vector.extract_strided_slice %315 {offsets = [0, 96], sizes = [8, 32], strides = [1, 1]} : vector<8x128xf32> to vector<8x32xf32>
    %321 = arith.mulf %318, %277 : vector<8x32xf32>
    %322 = arith.mulf %317, %319 : vector<8x32xf32>
    %323 = arith.addf %321, %322 : vector<8x32xf32>
    %324 = math.tanh %323 : vector<8x32xf32>
    %325 = arith.mulf %320, %324 : vector<8x32xf32>
    %c6_i32 = arith.constant 6 : i32
    %326 = vector.broadcast %c6_i32 : i32 to vector<8x1xi32>
    %327 = arith.cmpi sgt, %8, %326 : vector<8x1xi32>
    %cst_75 = arith.constant 0xFF800000 : f32
    %328 = vector.shape_cast %327 : vector<8x1xi1> to vector<8x1xi1>
    %329 = vector.broadcast %328 : vector<8x1xi1> to vector<8x32xi1>
    %330 = vector.broadcast %cst_75 : f32 to vector<8x32xf32>
    %331 = arith.select %329, %325, %330 : vector<8x32xi1>, vector<8x32xf32>
    %332 = arith.maximumf %286, %331 : vector<8x32xf32>
    %333 = vector.extract_strided_slice %5 {offsets = [56, 0], sizes = [8, 128], strides = [1, 1]} : vector<64x128xf32> to vector<8x128xf32>
    %cst_76 = arith.constant dense<0.000000e+00> : vector<8x128xf32>
    %334 = tpu.matmul %306, %6, %cst_76 {dimension_numbers = #tpu.dot_dimension_numbers<[1], [0], [0], [1], [0, 0, 1, 1], [], []>} : vector<8x32xf32>, vector<32x128xf32>, vector<8x128xf32> -> vector<8x128xf32>
    %335 = arith.addf %333, %334 : vector<8x128xf32>
    %cst_77 = arith.constant 5.000000e-01 : f32
    %336 = vector.broadcast %cst_77 : f32 to vector<8x128xf32>
    %337 = arith.mulf %336, %335 : vector<8x128xf32>
    %338 = math.tanh %337 : vector<8x128xf32>
    %cst_78 = arith.constant 1.000000e+00 : f32
    %339 = vector.broadcast %cst_78 : f32 to vector<8x128xf32>
    %340 = arith.addf %338, %339 : vector<8x128xf32>
    %cst_79 = arith.constant 5.000000e-01 : f32
    %341 = vector.broadcast %cst_79 : f32 to vector<8x128xf32>
    %342 = arith.mulf %341, %340 : vector<8x128xf32>
    %343 = math.tanh %335 : vector<8x128xf32>
    %344 = vector.extract_strided_slice %342 {offsets = [0, 0], sizes = [8, 32], strides = [1, 1]} : vector<8x128xf32> to vector<8x32xf32>
    %345 = vector.extract_strided_slice %342 {offsets = [0, 32], sizes = [8, 32], strides = [1, 1]} : vector<8x128xf32> to vector<8x32xf32>
    %346 = vector.extract_strided_slice %343 {offsets = [0, 64], sizes = [8, 32], strides = [1, 1]} : vector<8x128xf32> to vector<8x32xf32>
    %347 = vector.extract_strided_slice %342 {offsets = [0, 96], sizes = [8, 32], strides = [1, 1]} : vector<8x128xf32> to vector<8x32xf32>
    %348 = arith.mulf %345, %304 : vector<8x32xf32>
    %349 = arith.mulf %344, %346 : vector<8x32xf32>
    %350 = arith.addf %348, %349 : vector<8x32xf32>
    %351 = math.tanh %350 : vector<8x32xf32>
    %352 = arith.mulf %347, %351 : vector<8x32xf32>
    %353 = tpu.concatenate %352, %325 in 1 : vector<8x32xf32>, vector<8x32xf32> -> vector<8x64xf32>
    %cst_80 = arith.constant dense<0.000000e+00> : vector<8x128xf32>
    %354 = tpu.matmul %353, %7, %cst_80 {dimension_numbers = #tpu.dot_dimension_numbers<[1], [0], [0], [1], [0, 0, 1, 1], [], []>} : vector<8x64xf32>, vector<64x128xf32>, vector<8x128xf32> -> vector<8x128xf32>
    %cst_81 = arith.constant 5.000000e-01 : f32
    %355 = vector.broadcast %cst_81 : f32 to vector<8x128xf32>
    %356 = arith.mulf %355, %354 : vector<8x128xf32>
    %357 = math.tanh %356 : vector<8x128xf32>
    %cst_82 = arith.constant 1.000000e+00 : f32
    %358 = vector.broadcast %cst_82 : f32 to vector<8x128xf32>
    %359 = arith.addf %357, %358 : vector<8x128xf32>
    %cst_83 = arith.constant 5.000000e-01 : f32
    %360 = vector.broadcast %cst_83 : f32 to vector<8x128xf32>
    %361 = arith.mulf %360, %359 : vector<8x128xf32>
    %362 = math.tanh %354 : vector<8x128xf32>
    %363 = vector.extract_strided_slice %361 {offsets = [0, 0], sizes = [8, 32], strides = [1, 1]} : vector<8x128xf32> to vector<8x32xf32>
    %364 = vector.extract_strided_slice %361 {offsets = [0, 32], sizes = [8, 32], strides = [1, 1]} : vector<8x128xf32> to vector<8x32xf32>
    %365 = vector.extract_strided_slice %362 {offsets = [0, 64], sizes = [8, 32], strides = [1, 1]} : vector<8x128xf32> to vector<8x32xf32>
    %366 = vector.extract_strided_slice %361 {offsets = [0, 96], sizes = [8, 32], strides = [1, 1]} : vector<8x128xf32> to vector<8x32xf32>
    %367 = arith.mulf %364, %323 : vector<8x32xf32>
    %368 = arith.mulf %363, %365 : vector<8x32xf32>
    %369 = arith.addf %367, %368 : vector<8x32xf32>
    %370 = math.tanh %369 : vector<8x32xf32>
    %371 = arith.mulf %366, %370 : vector<8x32xf32>
    %c7_i32 = arith.constant 7 : i32
    %372 = vector.broadcast %c7_i32 : i32 to vector<8x1xi32>
    %373 = arith.cmpi sgt, %8, %372 : vector<8x1xi32>
    %cst_84 = arith.constant 0xFF800000 : f32
    %374 = vector.shape_cast %373 : vector<8x1xi1> to vector<8x1xi1>
    %375 = vector.broadcast %374 : vector<8x1xi1> to vector<8x32xi1>
    %376 = vector.broadcast %cst_84 : f32 to vector<8x32xf32>
    %377 = arith.select %375, %371, %376 : vector<8x32xi1>, vector<8x32xf32>
    %378 = arith.maximumf %332, %377 : vector<8x32xf32>
    %379 = vector.shape_cast %8 : vector<8x1xi32> to vector<1x8x1xi32>
    %cst_85 = arith.constant dense<-2147483648> : vector<1xi32>
    %380 = vector.multi_reduction <maxsi>, %379, %cst_85 [1, 2] : vector<1x8x1xi32> to vector<1xi32>
    %381 = vector.shape_cast %380 : vector<1xi32> to vector<1x1x1xi32>
    %382 = vector.extract %381[0, 0, 0] : i32 from vector<1x1x1xi32>
    %383 = vector.broadcast %382 : i32 to vector<8x1xi32>
    %384 = arith.cmpi slt, %8, %383 : vector<8x1xi32>
    %cst_86 = arith.constant 0.000000e+00 : f32
    %385 = vector.broadcast %cst_86 : f32 to vector<8x32xf32>
    %386 = arith.maximumf %378, %385 : vector<8x32xf32>
    %387 = vector.shape_cast %384 : vector<8x1xi1> to vector<8x1xi1>
    %388 = vector.broadcast %387 : vector<8x1xi1> to vector<8x32xi1>
    %389 = arith.select %388, %386, %378 : vector<8x32xi1>, vector<8x32xf32>
    %cst_87 = arith.constant 0.000000e+00 : f32
    %390 = vector.broadcast %cst_87 : f32 to vector<8x96xf32>
    %391 = tpu.concatenate %389, %390 in 1 : vector<8x32xf32>, vector<8x96xf32> -> vector<8x128xf32>
    %c0_88 = arith.constant 0 : index
    %c0_89 = arith.constant 0 : index
    %392 = vector.load %arg6[%c0_88, %c0_89] : memref<8x128xf32, #tpu.memory_space<vmem>>, vector<8x128xf32>
    tpu.vector_store %arg6[%c0_88, %c0_89], %391 {strides = array<i32>} : memref<8x128xf32, #tpu.memory_space<vmem>>, vector<8x128xf32>,
    return
  }
}

</mosaic_0001>

<llo_original>
// kernel: pallas_forward.1
$region0: #{pallas_forward.1}
  #allocation0 [shape = 'u32[]', space=smem, size = 0x4, offset = 0x4, fixed_abs, tag = 'smem constant byte address 0x4 - core index']
  #allocation1 [shape = 'u32[72,128]{1,0:T(1,128)}', space=vmem, size = 0x9000, scoped, tag = 'internal scratch']
  %s0 = inlined_call_operand.vmem [shape: f32[64,16], index: 0, kind: input, shape index: {}]
  %s1 = inlined_call_operand.vmem [shape: s32[8,1], index: 1, kind: input, shape index: {}]
  %s2 = inlined_call_operand.vmem [shape: f32[16,128], index: 2, kind: input, shape index: {}]
  %s3 = inlined_call_operand.vmem [shape: f32[1,128], index: 3, kind: input, shape index: {}]
  %s4 = inlined_call_operand.vmem [shape: f32[32,128], index: 4, kind: input, shape index: {}]
  %s5 = inlined_call_operand.vmem [shape: f32[64,128], index: 5, kind: input, shape index: {}]
  %s6 = inlined_call_operand.vmem [shape: f32[8,128], index: 6, kind: output, shape index: {}]
  %s7 = sld [smem:[#allocation0]]
  $region34: #{pallas_forward.1} parent=0
    _
  %s9 = ssub.s32 1, %s7
  %s10 = scalar_select 0, %s9, %s7
  // Predicated region
  $region2: #{pallas_forward.1} parent=0 // pred_check
    _
  $region3: #{pallas_forward.1} parent=0 // pred_check_branch
    %12 = sbr.rel (0) target = $region5
  $region4: #{pallas_forward.1} parent=0 // pred_region
    _
  $region5: #{pallas_forward.1} parent=0 // pred_fallthru
    _
  // Predicated region
  $region6: #{pallas_forward.1} parent=0 // pred_check
    _
  $region7: #{pallas_forward.1} parent=0 // pred_check_branch
    %14 = sbr.rel (0) target = $region9
  $region8: #{pallas_forward.1} parent=0 // pred_region
    _
  $region9: #{pallas_forward.1} parent=0 // pred_fallthru
    _
  // Predicated region
  $region10: #{pallas_forward.1} parent=0 // pred_check
    _
  $region11: #{pallas_forward.1} parent=0 // pred_check_branch
    %16 = sbr.rel (0) target = $region13
  $region12: #{pallas_forward.1} parent=0 // pred_region
    _
  $region13: #{pallas_forward.1} parent=0 // pred_fallthru
    _
  // Predicated region
  $region14: #{pallas_forward.1} parent=0 // pred_check
    _
  $region15: #{pallas_forward.1} parent=0 // pred_check_branch
    %18 = sbr.rel (0) target = $region17
  $region16: #{pallas_forward.1} parent=0 // pred_region
    _
  $region17: #{pallas_forward.1} parent=0 // pred_fallthru
    _
  // Predicated region
  $region18: #{pallas_forward.1} parent=0 // pred_check
    _
  $region19: #{pallas_forward.1} parent=0 // pred_check_branch
    %20 = sbr.rel (0) target = $region21
  $region20: #{pallas_forward.1} parent=0 // pred_region
    _
  $region21: #{pallas_forward.1} parent=0 // pred_fallthru
    _
  // Predicated region
  $region22: #{pallas_forward.1} parent=0 // pred_check
    _
  $region23: #{pallas_forward.1} parent=0 // pred_check_branch
    %22 = sbr.rel (0) target = $region25
  $region24: #{pallas_forward.1} parent=0 // pred_region
    _
  $region25: #{pallas_forward.1} parent=0 // pred_fallthru
    _
  %v23 = vld [vmem:[%s0] sm:$0xff]
  %v24 = vld [vmem:[%s0 + $0x8] sm:$0xff]
  %v25 = vld [vmem:[%s0 + $0x10] sm:$0xff]
  %v26 = vld [vmem:[%s0 + $0x18] sm:$0xff]
  %v27 = vld [vmem:[%s0 + $0x20] sm:$0xff]
  %v28 = vld [vmem:[%s0 + $0x28] sm:$0xff]
  %v29 = vld [vmem:[%s0 + $0x30] sm:$0xff]
  %v30 = vld [vmem:[%s0 + $0x38] sm:$0xff]
  %v31 = vld [vmem:[%s2] sm:$0xff]
  %v32 = vld [vmem:[%s2 + $0x8] sm:$0xff]
  %v33 = vld [vmem:[%s3] sm:$0x1]
  %v35 = vperm.slane %v33, 0
  %vm37 = vcmask 130048
  %v39 = vsel %vm37, %v23, 0
  %v42 = vsel %vm37, %v24, 0
  %v45 = vsel %vm37, %v25, 0
  %v48 = vsel %vm37, %v26, 0
  %v51 = vsel %vm37, %v27, 0
  %v54 = vsel %vm37, %v28, 0
  %v57 = vsel %vm37, %v29, 0
  %v60 = vsel %vm37, %v30, 0
  %62 = vmatpush.msra.mxu0 0.0
  %63 = vmatpush.msra.mxu0 0.0
  %64 = vmatpush.msra.mxu0 0.0
  %65 = vmatpush.msra.mxu0 0.0
  %66 = vmatpush.msra.mxu0 0.0
  %67 = vmatpush.msra.mxu0 0.0
  %68 = vmatpush.msra.mxu0 0.0
  %69 = vmatpush.msra.mxu0 0.0
  %70 = vmatpush.msra.mxu0 0.0
  %71 = vmatpush.msra.mxu0 0.0
  %72 = vmatpush.msra.mxu0 0.0
  %73 = vmatpush.msra.mxu0 0.0
  %74 = vmatpush.msra.mxu0 0.0
  %75 = vmatpush.msra.mxu0 0.0
  %76 = vmatpush.msra.mxu0 %v32
  %77 = vmatpush.msra.mxu0 %v31
  %78 = vmatmul.f32.gmra.mxu0 %v39
  %v79 = vpop.f32.mrf.mxu0
  %v80 = vadd.f32 %v35, %v79
  %81 = vmatmul.f32.gmra.mxu0 %v42
  %v82 = vpop.f32.mrf.mxu0
  %v83 = vadd.f32 %v35, %v82
  %84 = vmatmul.f32.gmra.mxu0 %v45
  %v85 = vpop.f32.mrf.mxu0
  %v86 = vadd.f32 %v35, %v85
  %87 = vmatmul.f32.gmra.mxu0 %v48
  %v88 = vpop.f32.mrf.mxu0
  %v89 = vadd.f32 %v35, %v88
  %90 = vmatmul.f32.gmra.mxu0 %v51
  %v91 = vpop.f32.mrf.mxu0
  %v92 = vadd.f32 %v35, %v91
  %93 = vmatmul.f32.gmra.mxu0 %v54
  %v94 = vpop.f32.mrf.mxu0
  %v95 = vadd.f32 %v35, %v94
  %96 = vmatmul.f32.gmra.mxu0 %v57
  %v97 = vpop.f32.mrf.mxu0
  %v98 = vadd.f32 %v35, %v97
  %99 = vmatmul.f32.gmra.mxu0 %v60
  %v100 = vpop.f32.mrf.mxu0
  %v101 = vadd.f32 %v35, %v100
  %102 = vdwg.mxu0
  %v103 = vld [vmem:[%s4] sm:$0xff]
  %v104 = vld [vmem:[%s4 + $0x8] sm:$0xff]
  %v105 = vld [vmem:[%s4 + $0x10] sm:$0xff]
  %v106 = vld [vmem:[%s4 + $0x18] sm:$0xff]
  %v107 = vld [vmem:[%s5] sm:$0xff]
  %v108 = vld [vmem:[%s5 + $0x8] sm:$0xff]
  %v109 = vld [vmem:[%s5 + $0x10] sm:$0xff]
  %v110 = vld [vmem:[%s5 + $0x18] sm:$0xff]
  %v111 = vld [vmem:[%s5 + $0x20] sm:$0xff]
  %v112 = vld [vmem:[%s5 + $0x28] sm:$0xff]
  %v113 = vld [vmem:[%s5 + $0x30] sm:$0xff]
  %v114 = vld [vmem:[%s5 + $0x38] sm:$0xff]
  %v115 = vld [vmem:[%s1] sm:$0xff]
  %vm116 = vcmask 261120
  %v118 = vsel %vm116, 0.0, 0
  %120 = vmatpush.msra.mxu0 0.0
  %121 = vmatpush.msra.mxu0 0.0
  %122 = vmatpush.msra.mxu0 0.0
  %123 = vmatpush.msra.mxu0 0.0
  %124 = vmatpush.msra.mxu0 0.0
  %125 = vmatpush.msra.mxu0 0.0
  %126 = vmatpush.msra.mxu0 0.0
  %127 = vmatpush.msra.mxu0 0.0
  %128 = vmatpush.msra.mxu0 0.0
  %129 = vmatpush.msra.mxu0 0.0
  %130 = vmatpush.msra.mxu0 0.0
  %131 = vmatpush.msra.mxu0 0.0
  %132 = vmatpush.msra.mxu0 %v106
  %133 = vmatpush.msra.mxu0 %v105
  %134 = vmatpush.msra.mxu0 %v104
  %135 = vmatpush.msra.mxu0 %v103
  %136 = vmatmul.f32.gmra.mxu0 %v118
  %v137 = vpop.f32.mrf.mxu0
  %v138 = vadd.f32 0.0, %v137
  %139 = vdwg.mxu0
  %v140 = vadd.f32 %v80, %v138
  %v141 = vmul.f32 %v140, 0.5
  %v142 = vtanh.pop %v141
  %v143 = vadd.f32 %v142, 1.0
  %v144 = vmul.f32 %v143, 0.5
  %v145 = vtanh.pop %v140
  %v146 = vmul.f32 %v144, 0.0
  %148 = vrot.lane.b32.xlu0 %v145, 64
  %v149 = vpop.permute.xlu0 %148
  %v151 = vmul.f32 %v144, %v149
  %153 = vrot.lane.b32.xlu0 %v151, 32
  %v154 = vpop.permute.xlu0 %153
  %v156 = vadd.f32 %v146, %v154
  %v157 = vtanh.pop %v156
  %159 = vrot.lane.b32.xlu0 %v157, 64
  %v160 = vpop.permute.xlu0 %159
  %v162 = vmul.f32 %v144, %v160
  %164 = vrot.lane.b32.xlu0 %v162, 32
  %v165 = vpop.permute.xlu0 %164
  %v167 = vsel %vm116, %v165, 0.0
  %vm168 = vcmask 523264
  %v170 = vsel %vm168, %v167, 0
  %172 = vmatpush.msra.mxu0 0.0
  %173 = vmatpush.msra.mxu0 0.0
  %174 = vmatpush.msra.mxu0 0.0
  %175 = vmatpush.msra.mxu0 0.0
  %176 = vmatpush.msra.mxu0 0.0
  %177 = vmatpush.msra.mxu0 0.0
  %178 = vmatpush.msra.mxu0 0.0
  %179 = vmatpush.msra.mxu0 0.0
  %180 = vmatpush.msra.mxu0 %v114
  %181 = vmatpush.msra.mxu0 %v113
  %182 = vmatpush.msra.mxu0 %v112
  %183 = vmatpush.msra.mxu0 %v111
  %184 = vmatpush.msra.mxu0 %v110
  %185 = vmatpush.msra.mxu0 %v109
  %186 = vmatpush.msra.mxu0 %v108
  %187 = vmatpush.msra.mxu0 %v107
  %188 = vmatmul.f32.gmra.mxu0 %v170
  %v189 = vpop.f32.mrf.mxu0
  %v190 = vadd.f32 0.0, %v189
  %191 = vdwg.mxu0
  %v192 = vmul.f32 %v190, 0.5
  %v193 = vtanh.pop %v192
  %v194 = vadd.f32 %v193, 1.0
  %v195 = vmul.f32 %v194, 0.5
  %v196 = vtanh.pop %v190
  %v197 = vmul.f32 %v195, 0.0
  %199 = vrot.lane.b32.xlu0 %v196, 64
  %v200 = vpop.permute.xlu0 %199
  %v202 = vmul.f32 %v195, %v200
  %204 = vrot.lane.b32.xlu0 %v202, 32
  %v205 = vpop.permute.xlu0 %204
  %v207 = vadd.f32 %v197, %v205
  %v208 = vtanh.pop %v207
  %210 = vrot.lane.b32.xlu0 %v208, 64
  %v211 = vpop.permute.xlu0 %210
  %v213 = vmul.f32 %v195, %v211
  %vm214 = vcmp.gt.s32.totalorder %v115, 0
  %v215 = vsel %vm214, 1, 0
  %216 = vset.pattern.permute.xlu0 0
  %217 = vperm.xlu0 %216, %v215
  %v218 = vpop.permute.xlu0 %217
  %vm219 = vcmp.eq.s32.totalorder %v218, 1
  %v220 = vsel %vm219, %v213, -inf
  %v221 = vsel %vm116, %v165, 0
  %223 = vmatpush.msra.mxu0 0.0
  %224 = vmatpush.msra.mxu0 0.0
  %225 = vmatpush.msra.mxu0 0.0
  %226 = vmatpush.msra.mxu0 0.0
  %227 = vmatpush.msra.mxu0 0.0
  %228 = vmatpush.msra.mxu0 0.0
  %229 = vmatpush.msra.mxu0 0.0
  %230 = vmatpush.msra.mxu0 0.0
  %231 = vmatpush.msra.mxu0 0.0
  %232 = vmatpush.msra.mxu0 0.0
  %233 = vmatpush.msra.mxu0 0.0
  %234 = vmatpush.msra.mxu0 0.0
  %235 = vmatpush.msra.mxu0 %v106
  %236 = vmatpush.msra.mxu0 %v105
  %237 = vmatpush.msra.mxu0 %v104
  %238 = vmatpush.msra.mxu0 %v103
  %239 = vmatmul.f32.gmra.mxu0 %v221
  %v240 = vpop.f32.mrf.mxu0
  %v241 = vadd.f32 0.0, %v240
  %242 = vdwg.mxu0
  %v243 = vadd.f32 %v83, %v241
  %v244 = vmul.f32 %v243, 0.5
  %v245 = vtanh.pop %v244
  %v246 = vadd.f32 %v245, 1.0
  %v247 = vmul.f32 %v246, 0.5
  %v248 = vtanh.pop %v243
  %v249 = vmul.f32 %v247, %v156
  %251 = vrot.lane.b32.xlu0 %v248, 64
  %v252 = vpop.permute.xlu0 %251
  %v254 = vmul.f32 %v247, %v252
  %256 = vrot.lane.b32.xlu0 %v254, 32
  %v257 = vpop.permute.xlu0 %256
  %v259 = vadd.f32 %v249, %v257
  %v260 = vtanh.pop %v259
  %262 = vrot.lane.b32.xlu0 %v260, 64
  %v263 = vpop.permute.xlu0 %262
  %v265 = vmul.f32 %v247, %v263
  %267 = vrot.lane.b32.xlu0 %v265, 32
  %v268 = vpop.permute.xlu0 %267
  %271 = vrot.lane.b32.xlu0 %v213, 64
  %v272 = vpop.permute.xlu0 %271
  %v274 = vsel %vm116, %v268, %v272
  %v276 = vsel %vm168, %v274, 0
  %278 = vmatpush.msra.mxu0 0.0
  %279 = vmatpush.msra.mxu0 0.0
  %280 = vmatpush.msra.mxu0 0.0
  %281 = vmatpush.msra.mxu0 0.0
  %282 = vmatpush.msra.mxu0 0.0
  %283 = vmatpush.msra.mxu0 0.0
  %284 = vmatpush.msra.mxu0 0.0
  %285 = vmatpush.msra.mxu0 0.0
  %286 = vmatpush.msra.mxu0 %v114
  %287 = vmatpush.msra.mxu0 %v113
  %288 = vmatpush.msra.mxu0 %v112
  %289 = vmatpush.msra.mxu0 %v111
  %290 = vmatpush.msra.mxu0 %v110
  %291 = vmatpush.msra.mxu0 %v109
  %292 = vmatpush.msra.mxu0 %v108
  %293 = vmatpush.msra.mxu0 %v107
  %294 = vmatmul.f32.gmra.mxu0 %v276
  %v295 = vpop.f32.mrf.mxu0
  %v296 = vadd.f32 0.0, %v295
  %297 = vdwg.mxu0
  %v298 = vmul.f32 %v296, 0.5
  %v299 = vtanh.pop %v298
  %v300 = vadd.f32 %v299, 1.0
  %v301 = vmul.f32 %v300, 0.5
  %v302 = vtanh.pop %v296
  %v303 = vmul.f32 %v301, %v207
  %305 = vrot.lane.b32.xlu0 %v302, 64
  %v306 = vpop.permute.xlu0 %305
  %v308 = vmul.f32 %v301, %v306
  %310 = vrot.lane.b32.xlu0 %v308, 32
  %v311 = vpop.permute.xlu0 %310
  %v313 = vadd.f32 %v303, %v311
  %v314 = vtanh.pop %v313
  %316 = vrot.lane.b32.xlu0 %v314, 64
  %v317 = vpop.permute.xlu0 %316
  %v319 = vmul.f32 %v301, %v317
  %vm320 = vcmp.gt.s32.totalorder %v115, 1
  %v321 = vsel %vm320, 1, 0
  %322 = vset.pattern.permute.xlu0 0
  %323 = vperm.xlu0 %322, %v321
  %v324 = vpop.permute.xlu0 %323
  %vm325 = vcmp.eq.s32.totalorder %v324, 1
  %v326 = vsel %vm325, %v319, -inf
  %v327 = vmax.f32 %v220, %v326
  %v328 = vsel %vm116, %v268, 0
  %330 = vmatpush.msra.mxu0 0.0
  %331 = vmatpush.msra.mxu0 0.0
  %332 = vmatpush.msra.mxu0 0.0
  %333 = vmatpush.msra.mxu0 0.0
  %334 = vmatpush.msra.mxu0 0.0
  %335 = vmatpush.msra.mxu0 0.0
  %336 = vmatpush.msra.mxu0 0.0
  %337 = vmatpush.msra.mxu0 0.0
  %338 = vmatpush.msra.mxu0 0.0
  %339 = vmatpush.msra.mxu0 0.0
  %340 = vmatpush.msra.mxu0 0.0
  %341 = vmatpush.msra.mxu0 0.0
  %342 = vmatpush.msra.mxu0 %v106
  %343 = vmatpush.msra.mxu0 %v105
  %344 = vmatpush.msra.mxu0 %v104
  %345 = vmatpush.msra.mxu0 %v103
  %346 = vmatmul.f32.gmra.mxu0 %v328
  %v347 = vpop.f32.mrf.mxu0
  %v348 = vadd.f32 0.0, %v347
  %349 = vdwg.mxu0
  %v350 = vadd.f32 %v86, %v348
  %v351 = vmul.f32 %v350, 0.5
  %v352 = vtanh.pop %v351
  %v353 = vadd.f32 %v352, 1.0
  %v354 = vmul.f32 %v353, 0.5
  %v355 = vtanh.pop %v350
  %v356 = vmul.f32 %v354, %v259
  %358 = vrot.lane.b32.xlu0 %v355, 64
  %v359 = vpop.permute.xlu0 %358
  %v361 = vmul.f32 %v354, %v359
  %363 = vrot.lane.b32.xlu0 %v361, 32
  %v364 = vpop.permute.xlu0 %363
  %v366 = vadd.f32 %v356, %v364
  %v367 = vtanh.pop %v366
  %369 = vrot.lane.b32.xlu0 %v367, 64
  %v370 = vpop.permute.xlu0 %369
  %v372 = vmul.f32 %v354, %v370
  %374 = vrot.lane.b32.xlu0 %v372, 32
  %v375 = vpop.permute.xlu0 %374
  %378 = vrot.lane.b32.xlu0 %v319, 64
  %v379 = vpop.permute.xlu0 %378
  %v381 = vsel %vm116, %v375, %v379
  %v383 = vsel %vm168, %v381, 0
  %385 = vmatpush.msra.mxu0 0.0
  %386 = vmatpush.msra.mxu0 0.0
  %387 = vmatpush.msra.mxu0 0.0
  %388 = vmatpush.msra.mxu0 0.0
  %389 = vmatpush.msra.mxu0 0.0
  %390 = vmatpush.msra.mxu0 0.0
  %391 = vmatpush.msra.mxu0 0.0
  %392 = vmatpush.msra.mxu0 0.0
  %393 = vmatpush.msra.mxu0 %v114
  %394 = vmatpush.msra.mxu0 %v113
  %395 = vmatpush.msra.mxu0 %v112
  %396 = vmatpush.msra.mxu0 %v111
  %397 = vmatpush.msra.mxu0 %v110
  %398 = vmatpush.msra.mxu0 %v109
  %399 = vmatpush.msra.mxu0 %v108
  %400 = vmatpush.msra.mxu0 %v107
  %401 = vmatmul.f32.gmra.mxu0 %v383
  %v402 = vpop.f32.mrf.mxu0
  %v403 = vadd.f32 0.0, %v402
  %404 = vdwg.mxu0
  %v405 = vmul.f32 %v403, 0.5
  %v406 = vtanh.pop %v405
  %v407 = vadd.f32 %v406, 1.0
  %v408 = vmul.f32 %v407, 0.5
  %v409 = vtanh.pop %v403
  %v410 = vmul.f32 %v408, %v313
  %412 = vrot.lane.b32.xlu0 %v409, 64
  %v413 = vpop.permute.xlu0 %412
  %v415 = vmul.f32 %v408, %v413
  %417 = vrot.lane.b32.xlu0 %v415, 32
  %v418 = vpop.permute.xlu0 %417
  %v420 = vadd.f32 %v410, %v418
  %v421 = vtanh.pop %v420
  %423 = vrot.lane.b32.xlu0 %v421, 64
  %v424 = vpop.permute.xlu0 %423
  %v426 = vmul.f32 %v408, %v424
  %vm427 = vcmp.gt.s32.totalorder %v115, 2
  %v428 = vsel %vm427, 1, 0
  %429 = vset.pattern.permute.xlu0 0
  %430 = vperm.xlu0 %429, %v428
  %v431 = vpop.permute.xlu0 %430
  %vm432 = vcmp.eq.s32.totalorder %v431, 1
  %v433 = vsel %vm432, %v426, -inf
  %v434 = vmax.f32 %v327, %v433
  %v435 = vsel %vm116, %v375, 0
  %437 = vmatpush.msra.mxu0 0.0
  %438 = vmatpush.msra.mxu0 0.0
  %439 = vmatpush.msra.mxu0 0.0
  %440 = vmatpush.msra.mxu0 0.0
  %441 = vmatpush.msra.mxu0 0.0
  %442 = vmatpush.msra.mxu0 0.0
  %443 = vmatpush.msra.mxu0 0.0
  %444 = vmatpush.msra.mxu0 0.0
  %445 = vmatpush.msra.mxu0 0.0
  %446 = vmatpush.msra.mxu0 0.0
  %447 = vmatpush.msra.mxu0 0.0
  %448 = vmatpush.msra.mxu0 0.0
  %449 = vmatpush.msra.mxu0 %v106
  %450 = vmatpush.msra.mxu0 %v105
  %451 = vmatpush.msra.mxu0 %v104
  %452 = vmatpush.msra.mxu0 %v103
  %453 = vmatmul.f32.gmra.mxu0 %v435
  %v454 = vpop.f32.mrf.mxu0
  %v455 = vadd.f32 0.0, %v454
  %456 = vdwg.mxu0
  %v457 = vadd.f32 %v89, %v455
  %v458 = vmul.f32 %v457, 0.5
  %v459 = vtanh.pop %v458
  %v460 = vadd.f32 %v459, 1.0
  %v461 = vmul.f32 %v460, 0.5
  %v462 = vtanh.pop %v457
  %v463 = vmul.f32 %v461, %v366
  %465 = vrot.lane.b32.xlu0 %v462, 64
  %v466 = vpop.permute.xlu0 %465
  %v468 = vmul.f32 %v461, %v466
  %470 = vrot.lane.b32.xlu0 %v468, 32
  %v471 = vpop.permute.xlu0 %470
  %v473 = vadd.f32 %v463, %v471
  %v474 = vtanh.pop %v473
  %476 = vrot.lane.b32.xlu0 %v474, 64
  %v477 = vpop.permute.xlu0 %476
  %v479 = vmul.f32 %v461, %v477
  %481 = vrot.lane.b32.xlu0 %v479, 32
  %v482 = vpop.permute.xlu0 %481
  %485 = vrot.lane.b32.xlu0 %v426, 64
  %v486 = vpop.permute.xlu0 %485
  %v488 = vsel %vm116, %v482, %v486
  %v490 = vsel %vm168, %v488, 0
  %492 = vmatpush.msra.mxu0 0.0
  %493 = vmatpush.msra.mxu0 0.0
  %494 = vmatpush.msra.mxu0 0.0
  %495 = vmatpush.msra.mxu0 0.0
  %496 = vmatpush.msra.mxu0 0.0
  %497 = vmatpush.msra.mxu0 0.0
  %498 = vmatpush.msra.mxu0 0.0
  %499 = vmatpush.msra.mxu0 0.0
  %500 = vmatpush.msra.mxu0 %v114
  %501 = vmatpush.msra.mxu0 %v113
  %502 = vmatpush.msra.mxu0 %v112
  %503 = vmatpush.msra.mxu0 %v111
  %504 = vmatpush.msra.mxu0 %v110
  %505 = vmatpush.msra.mxu0 %v109
  %506 = vmatpush.msra.mxu0 %v108
  %507 = vmatpush.msra.mxu0 %v107
  %508 = vmatmul.f32.gmra.mxu0 %v490
  %v509 = vpop.f32.mrf.mxu0
  %v510 = vadd.f32 0.0, %v509
  %511 = vdwg.mxu0
  %v512 = vmul.f32 %v510, 0.5
  %v513 = vtanh.pop %v512
  %v514 = vadd.f32 %v513, 1.0
  %v515 = vmul.f32 %v514, 0.5
  %v516 = vtanh.pop %v510
  %v517 = vmul.f32 %v515, %v420
  %519 = vrot.lane.b32.xlu0 %v516, 64
  %v520 = vpop.permute.xlu0 %519
  %v522 = vmul.f32 %v515, %v520
  %524 = vrot.lane.b32.xlu0 %v522, 32
  %v525 = vpop.permute.xlu0 %524
  %v527 = vadd.f32 %v517, %v525
  %v528 = vtanh.pop %v527
  %530 = vrot.lane.b32.xlu0 %v528, 64
  %v531 = vpop.permute.xlu0 %530
  %v533 = vmul.f32 %v515, %v531
  %vm534 = vcmp.gt.s32.totalorder %v115, 3
  %v535 = vsel %vm534, 1, 0
  %536 = vset.pattern.permute.xlu0 0
  %537 = vperm.xlu0 %536, %v535
  %v538 = vpop.permute.xlu0 %537
  %vm539 = vcmp.eq.s32.totalorder %v538, 1
  %v540 = vsel %vm539, %v533, -inf
  %v541 = vmax.f32 %v434, %v540
  %v542 = vsel %vm116, %v482, 0
  %544 = vmatpush.msra.mxu0 0.0
  %545 = vmatpush.msra.mxu0 0.0
  %546 = vmatpush.msra.mxu0 0.0
  %547 = vmatpush.msra.mxu0 0.0
  %548 = vmatpush.msra.mxu0 0.0
  %549 = vmatpush.msra.mxu0 0.0
  %550 = vmatpush.msra.mxu0 0.0
  %551 = vmatpush.msra.mxu0 0.0
  %552 = vmatpush.msra.mxu0 0.0
  %553 = vmatpush.msra.mxu0 0.0
  %554 = vmatpush.msra.mxu0 0.0
  %555 = vmatpush.msra.mxu0 0.0
  %556 = vmatpush.msra.mxu0 %v106
  %557 = vmatpush.msra.mxu0 %v105
  %558 = vmatpush.msra.mxu0 %v104
  %559 = vmatpush.msra.mxu0 %v103
  %560 = vmatmul.f32.gmra.mxu0 %v542
  %v561 = vpop.f32.mrf.mxu0
  %v562 = vadd.f32 0.0, %v561
  %563 = vdwg.mxu0
  %v564 = vadd.f32 %v92, %v562
  %v565 = vmul.f32 %v564, 0.5
  %v566 = vtanh.pop %v565
  %v567 = vadd.f32 %v566, 1.0
  %v568 = vmul.f32 %v567, 0.5
  %v569 = vtanh.pop %v564
  %v570 = vmul.f32 %v568, %v473
  %572 = vrot.lane.b32.xlu0 %v569, 64
  %v573 = vpop.permute.xlu0 %572
  %v575 = vmul.f32 %v568, %v573
  %577 = vrot.lane.b32.xlu0 %v575, 32
  %v578 = vpop.permute.xlu0 %577
  %v580 = vadd.f32 %v570, %v578
  %v581 = vtanh.pop %v580
  %583 = vrot.lane.b32.xlu0 %v581, 64
  %v584 = vpop.permute.xlu0 %583
  %v586 = vmul.f32 %v568, %v584
  %588 = vrot.lane.b32.xlu0 %v586, 32
  %v589 = vpop.permute.xlu0 %588
  %592 = vrot.lane.b32.xlu0 %v533, 64
  %v593 = vpop.permute.xlu0 %592
  %v595 = vsel %vm116, %v589, %v593
  %v597 = vsel %vm168, %v595, 0
  %599 = vmatpush.msra.mxu0 0.0
  %600 = vmatpush.msra.mxu0 0.0
  %601 = vmatpush.msra.mxu0 0.0
  %602 = vmatpush.msra.mxu0 0.0
  %603 = vmatpush.msra.mxu0 0.0
  %604 = vmatpush.msra.mxu0 0.0
  %605 = vmatpush.msra.mxu0 0.0
  %606 = vmatpush.msra.mxu0 0.0
  %607 = vmatpush.msra.mxu0 %v114
  %608 = vmatpush.msra.mxu0 %v113
  %609 = vmatpush.msra.mxu0 %v112
  %610 = vmatpush.msra.mxu0 %v111
  %611 = vmatpush.msra.mxu0 %v110
  %612 = vmatpush.msra.mxu0 %v109
  %613 = vmatpush.msra.mxu0 %v108
  %614 = vmatpush.msra.mxu0 %v107
  %615 = vmatmul.f32.gmra.mxu0 %v597
  %v616 = vpop.f32.mrf.mxu0
  %v617 = vadd.f32 0.0, %v616
  %618 = vdwg.mxu0
  %v619 = vmul.f32 %v617, 0.5
  %v620 = vtanh.pop %v619
  %v621 = vadd.f32 %v620, 1.0
  %v622 = vmul.f32 %v621, 0.5
  %v623 = vtanh.pop %v617
  %v624 = vmul.f32 %v622, %v527
  %626 = vrot.lane.b32.xlu0 %v623, 64
  %v627 = vpop.permute.xlu0 %626
  %v629 = vmul.f32 %v622, %v627
  %631 = vrot.lane.b32.xlu0 %v629, 32
  %v632 = vpop.permute.xlu0 %631
  %v634 = vadd.f32 %v624, %v632
  %v635 = vtanh.pop %v634
  %637 = vrot.lane.b32.xlu0 %v635, 64
  %v638 = vpop.permute.xlu0 %637
  %v640 = vmul.f32 %v622, %v638
  %vm641 = vcmp.gt.s32.totalorder %v115, 4
  %v642 = vsel %vm641, 1, 0
  %643 = vset.pattern.permute.xlu0 0
  %644 = vperm.xlu0 %643, %v642
  %v645 = vpop.permute.xlu0 %644
  %vm646 = vcmp.eq.s32.totalorder %v645, 1
  %v647 = vsel %vm646, %v640, -inf
  %v648 = vmax.f32 %v541, %v647
  %v649 = vsel %vm116, %v589, 0
  %651 = vmatpush.msra.mxu0 0.0
  %652 = vmatpush.msra.mxu0 0.0
  %653 = vmatpush.msra.mxu0 0.0
  %654 = vmatpush.msra.mxu0 0.0
  %655 = vmatpush.msra.mxu0 0.0
  %656 = vmatpush.msra.mxu0 0.0
  %657 = vmatpush.msra.mxu0 0.0
  %658 = vmatpush.msra.mxu0 0.0
  %659 = vmatpush.msra.mxu0 0.0
  %660 = vmatpush.msra.mxu0 0.0
  %661 = vmatpush.msra.mxu0 0.0
  %662 = vmatpush.msra.mxu0 0.0
  %663 = vmatpush.msra.mxu0 %v106
  %664 = vmatpush.msra.mxu0 %v105
  %665 = vmatpush.msra.mxu0 %v104
  %666 = vmatpush.msra.mxu0 %v103
  %667 = vmatmul.f32.gmra.mxu0 %v649
  %v668 = vpop.f32.mrf.mxu0
  %v669 = vadd.f32 0.0, %v668
  %670 = vdwg.mxu0
  %v671 = vadd.f32 %v95, %v669
  %v672 = vmul.f32 %v671, 0.5
  %v673 = vtanh.pop %v672
  %v674 = vadd.f32 %v673, 1.0
  %v675 = vmul.f32 %v674, 0.5
  %v676 = vtanh.pop %v671
  %v677 = vmul.f32 %v675, %v580
  %679 = vrot.lane.b32.xlu0 %v676, 64
  %v680 = vpop.permute.xlu0 %679
  %v682 = vmul.f32 %v675, %v680
  %684 = vrot.lane.b32.xlu0 %v682, 32
  %v685 = vpop.permute.xlu0 %684
  %v687 = vadd.f32 %v677, %v685
  %v688 = vtanh.pop %v687
  %690 = vrot.lane.b32.xlu0 %v688, 64
  %v691 = vpop.permute.xlu0 %690
  %v693 = vmul.f32 %v675, %v691
  %695 = vrot.lane.b32.xlu0 %v693, 32
  %v696 = vpop.permute.xlu0 %695
  %699 = vrot.lane.b32.xlu0 %v640, 64
  %v700 = vpop.permute.xlu0 %699
  %v702 = vsel %vm116, %v696, %v700
  %v704 = vsel %vm168, %v702, 0
  %706 = vmatpush.msra.mxu0 0.0
  %707 = vmatpush.msra.mxu0 0.0
  %708 = vmatpush.msra.mxu0 0.0
  %709 = vmatpush.msra.mxu0 0.0
  %710 = vmatpush.msra.mxu0 0.0
  %711 = vmatpush.msra.mxu0 0.0
  %712 = vmatpush.msra.mxu0 0.0
  %713 = vmatpush.msra.mxu0 0.0
  %714 = vmatpush.msra.mxu0 %v114
  %715 = vmatpush.msra.mxu0 %v113
  %716 = vmatpush.msra.mxu0 %v112
  %717 = vmatpush.msra.mxu0 %v111
  %718 = vmatpush.msra.mxu0 %v110
  %719 = vmatpush.msra.mxu0 %v109
  %720 = vmatpush.msra.mxu0 %v108
  %721 = vmatpush.msra.mxu0 %v107
  %722 = vmatmul.f32.gmra.mxu0 %v704
  %v723 = vpop.f32.mrf.mxu0
  %v724 = vadd.f32 0.0, %v723
  %725 = vdwg.mxu0
  %v726 = vmul.f32 %v724, 0.5
  %v727 = vtanh.pop %v726
  %v728 = vadd.f32 %v727, 1.0
  %v729 = vmul.f32 %v728, 0.5
  %v730 = vtanh.pop %v724
  %v731 = vmul.f32 %v729, %v634
  %733 = vrot.lane.b32.xlu0 %v730, 64
  %v734 = vpop.permute.xlu0 %733
  %v736 = vmul.f32 %v729, %v734
  %738 = vrot.lane.b32.xlu0 %v736, 32
  %v739 = vpop.permute.xlu0 %738
  %v741 = vadd.f32 %v731, %v739
  %v742 = vtanh.pop %v741
  %744 = vrot.lane.b32.xlu0 %v742, 64
  %v745 = vpop.permute.xlu0 %744
  %v747 = vmul.f32 %v729, %v745
  %vm748 = vcmp.gt.s32.totalorder %v115, 5
  %v749 = vsel %vm748, 1, 0
  %750 = vset.pattern.permute.xlu0 0
  %751 = vperm.xlu0 %750, %v749
  %v752 = vpop.permute.xlu0 %751
  %vm753 = vcmp.eq.s32.totalorder %v752, 1
  %v754 = vsel %vm753, %v747, -inf
  %v755 = vmax.f32 %v648, %v754
  %v756 = vsel %vm116, %v696, 0
  %758 = vmatpush.msra.mxu0 0.0
  %759 = vmatpush.msra.mxu0 0.0
  %760 = vmatpush.msra.mxu0 0.0
  %761 = vmatpush.msra.mxu0 0.0
  %762 = vmatpush.msra.mxu0 0.0
  %763 = vmatpush.msra.mxu0 0.0
  %764 = vmatpush.msra.mxu0 0.0
  %765 = vmatpush.msra.mxu0 0.0
  %766 = vmatpush.msra.mxu0 0.0
  %767 = vmatpush.msra.mxu0 0.0
  %768 = vmatpush.msra.mxu0 0.0
  %769 = vmatpush.msra.mxu0 0.0
  %770 = vmatpush.msra.mxu0 %v106
  %771 = vmatpush.msra.mxu0 %v105
  %772 = vmatpush.msra.mxu0 %v104
  %773 = vmatpush.msra.mxu0 %v103
  %774 = vmatmul.f32.gmra.mxu0 %v756
  %v775 = vpop.f32.mrf.mxu0
  %v776 = vadd.f32 0.0, %v775
  %777 = vdwg.mxu0
  %v778 = vadd.f32 %v98, %v776
  %v779 = vmul.f32 %v778, 0.5
  %v780 = vtanh.pop %v779
  %v781 = vadd.f32 %v780, 1.0
  %v782 = vmul.f32 %v781, 0.5
  %v783 = vtanh.pop %v778
  %v784 = vmul.f32 %v782, %v687
  %786 = vrot.lane.b32.xlu0 %v783, 64
  %v787 = vpop.permute.xlu0 %786
  %v789 = vmul.f32 %v782, %v787
  %791 = vrot.lane.b32.xlu0 %v789, 32
  %v792 = vpop.permute.xlu0 %791
  %v794 = vadd.f32 %v784, %v792
  %v795 = vtanh.pop %v794
  %797 = vrot.lane.b32.xlu0 %v795, 64
  %v798 = vpop.permute.xlu0 %797
  %v800 = vmul.f32 %v782, %v798
  %802 = vrot.lane.b32.xlu0 %v800, 32
  %v803 = vpop.permute.xlu0 %802
  %806 = vrot.lane.b32.xlu0 %v747, 64
  %v807 = vpop.permute.xlu0 %806
  %v809 = vsel %vm116, %v803, %v807
  %v811 = vsel %vm168, %v809, 0
  %813 = vmatpush.msra.mxu0 0.0
  %814 = vmatpush.msra.mxu0 0.0
  %815 = vmatpush.msra.mxu0 0.0
  %816 = vmatpush.msra.mxu0 0.0
  %817 = vmatpush.msra.mxu0 0.0
  %818 = vmatpush.msra.mxu0 0.0
  %819 = vmatpush.msra.mxu0 0.0
  %820 = vmatpush.msra.mxu0 0.0
  %821 = vmatpush.msra.mxu0 %v114
  %822 = vmatpush.msra.mxu0 %v113
  %823 = vmatpush.msra.mxu0 %v112
  %824 = vmatpush.msra.mxu0 %v111
  %825 = vmatpush.msra.mxu0 %v110
  %826 = vmatpush.msra.mxu0 %v109
  %827 = vmatpush.msra.mxu0 %v108
  %828 = vmatpush.msra.mxu0 %v107
  %829 = vmatmul.f32.gmra.mxu0 %v811
  %v830 = vpop.f32.mrf.mxu0
  %v831 = vadd.f32 0.0, %v830
  %832 = vdwg.mxu0
  %v833 = vmul.f32 %v831, 0.5
  %v834 = vtanh.pop %v833
  %v835 = vadd.f32 %v834, 1.0
  %v836 = vmul.f32 %v835, 0.5
  %v837 = vtanh.pop %v831
  %v838 = vmul.f32 %v836, %v741
  %840 = vrot.lane.b32.xlu0 %v837, 64
  %v841 = vpop.permute.xlu0 %840
  %v843 = vmul.f32 %v836, %v841
  %845 = vrot.lane.b32.xlu0 %v843, 32
  %v846 = vpop.permute.xlu0 %845
  %v848 = vadd.f32 %v838, %v846
  %v849 = vtanh.pop %v848
  %851 = vrot.lane.b32.xlu0 %v849, 64
  %v852 = vpop.permute.xlu0 %851
  %v854 = vmul.f32 %v836, %v852
  %vm855 = vcmp.gt.s32.totalorder %v115, 6
  %v856 = vsel %vm855, 1, 0
  %857 = vset.pattern.permute.xlu0 0
  %858 = vperm.xlu0 %857, %v856
  %v859 = vpop.permute.xlu0 %858
  %vm860 = vcmp.eq.s32.totalorder %v859, 1
  %v861 = vsel %vm860, %v854, -inf
  %v862 = vmax.f32 %v755, %v861
  %v863 = vsel %vm116, %v803, 0
  %865 = vmatpush.msra.mxu0 0.0
  %866 = vmatpush.msra.mxu0 0.0
  %867 = vmatpush.msra.mxu0 0.0
  %868 = vmatpush.msra.mxu0 0.0
  %869 = vmatpush.msra.mxu0 0.0
  %870 = vmatpush.msra.mxu0 0.0
  %871 = vmatpush.msra.mxu0 0.0
  %872 = vmatpush.msra.mxu0 0.0
  %873 = vmatpush.msra.mxu0 0.0
  %874 = vmatpush.msra.mxu0 0.0
  %875 = vmatpush.msra.mxu0 0.0
  %876 = vmatpush.msra.mxu0 0.0
  %877 = vmatpush.msra.mxu0 %v106
  %878 = vmatpush.msra.mxu0 %v105
  %879 = vmatpush.msra.mxu0 %v104
  %880 = vmatpush.msra.mxu0 %v103
  %881 = vmatmul.f32.gmra.mxu0 %v863
  %v882 = vpop.f32.mrf.mxu0
  %v883 = vadd.f32 0.0, %v882
  %884 = vdwg.mxu0
  %v885 = vadd.f32 %v101, %v883
  %v886 = vmul.f32 %v885, 0.5
  %v887 = vtanh.pop %v886
  %v888 = vadd.f32 %v887, 1.0
  %v889 = vmul.f32 %v888, 0.5
  %v890 = vtanh.pop %v885
  %v891 = vmul.f32 %v889, %v794
  %893 = vrot.lane.b32.xlu0 %v890, 64
  %v894 = vpop.permute.xlu0 %893
  %v896 = vmul.f32 %v889, %v894
  %898 = vrot.lane.b32.xlu0 %v896, 32
  %v899 = vpop.permute.xlu0 %898
  %v901 = vadd.f32 %v891, %v899
  %v902 = vtanh.pop %v901
  %904 = vrot.lane.b32.xlu0 %v902, 64
  %v905 = vpop.permute.xlu0 %904
  %v907 = vmul.f32 %v889, %v905
  %909 = vrot.lane.b32.xlu0 %v907, 32
  %v910 = vpop.permute.xlu0 %909
  %913 = vrot.lane.b32.xlu0 %v854, 64
  %v914 = vpop.permute.xlu0 %913
  %v916 = vsel %vm116, %v910, %v914
  %v918 = vsel %vm168, %v916, 0
  %920 = vmatpush.msra.mxu0 0.0
  %921 = vmatpush.msra.mxu0 0.0
  %922 = vmatpush.msra.mxu0 0.0
  %923 = vmatpush.msra.mxu0 0.0
  %924 = vmatpush.msra.mxu0 0.0
  %925 = vmatpush.msra.mxu0 0.0
  %926 = vmatpush.msra.mxu0 0.0
  %927 = vmatpush.msra.mxu0 0.0
  %928 = vmatpush.msra.mxu0 %v114
  %929 = vmatpush.msra.mxu0 %v113
  %930 = vmatpush.msra.mxu0 %v112
  %931 = vmatpush.msra.mxu0 %v111
  %932 = vmatpush.msra.mxu0 %v110
  %933 = vmatpush.msra.mxu0 %v109
  %934 = vmatpush.msra.mxu0 %v108
  %935 = vmatpush.msra.mxu0 %v107
  %936 = vmatmul.f32.gmra.mxu0 %v918
  %v937 = vpop.f32.mrf.mxu0
  %v938 = vadd.f32 0.0, %v937
  %939 = vdwg.mxu0
  %v940 = vmul.f32 %v938, 0.5
  %v941 = vtanh.pop %v940
  %v942 = vadd.f32 %v941, 1.0
  %v943 = vmul.f32 %v942, 0.5
  %v944 = vtanh.pop %v938
  %v945 = vmul.f32 %v943, %v848
  %947 = vrot.lane.b32.xlu0 %v944, 64
  %v948 = vpop.permute.xlu0 %947
  %v950 = vmul.f32 %v943, %v948
  %952 = vrot.lane.b32.xlu0 %v950, 32
  %v953 = vpop.permute.xlu0 %952
  %v955 = vadd.f32 %v945, %v953
  %v956 = vtanh.pop %v955
  %958 = vrot.lane.b32.xlu0 %v956, 64
  %v959 = vpop.permute.xlu0 %958
  %v961 = vmul.f32 %v943, %v959
  %vm962 = vcmp.gt.s32.totalorder %v115, 7
  %v963 = vsel %vm962, 1, 0
  %964 = vset.pattern.permute.xlu0 0
  %965 = vperm.xlu0 %964, %v963
  %v966 = vpop.permute.xlu0 %965
  %vm967 = vcmp.eq.s32.totalorder %v966, 1
  %v968 = vsel %vm967, %v961, -inf
  %v969 = vmax.f32 %v862, %v968
  %vm970 = vcmask 7168
  %v971 = vsel %vm970, %v115, 2147483648
  %v972 = vand.u32 %v971, 65535
  %v973 = vshra.s32 %v971, 16
  %v974 = vcvt.s32.f32 %v972
  %v975 = vcvt.s32.f32 %v973
  %976 = vmax.xlane.f32.xlu0 %v975
  %v977 = vpop.xlane.xlu0 %976
  %vm978 = vcmp.eq.f32.partialorder %v975, %v977
  %v979 = vsel %vm978, %v974, -inf
  %980 = vmax.xlane.f32.xlu0 %v979
  %v981 = vpop.xlane.xlu0 %980
  %v982 = vcvt.f32.s32 %v981
  %v983 = vcvt.f32.s32 %v977
  %v984 = vshll.u32 %v983, 16
  %v985 = vadd.s32 %v984, %v982
  %v986 = vrot.slane %v985, 4
  %vm987 = vcmp.gt.s32.totalorder %v985, %v986
  %v988 = vsel %vm987, %v985, %v986
  %v989 = vrot.slane %v988, 2
  %vm990 = vcmp.gt.s32.totalorder %v988, %v989
  %v991 = vsel %vm990, %v988, %v989
  %v992 = vrot.slane %v991, 1
  %vm993 = vcmp.gt.s32.totalorder %v991, %v992
  %v994 = vsel %vm993, %v991, %v992
  %s995 = vtos %v994
  %v996 = vstv %s995
  %vm997 = vcmp.lt.s32.totalorder %v115, %v996
  %v998 = vmax.f32 %v969, 0.0
  %v999 = vsel %vm997, 1, 0
  %1000 = vset.pattern.permute.xlu0 0
  %1001 = vperm.xlu0 %1000, %v999
  %v1002 = vpop.permute.xlu0 %1001
  %vm1003 = vcmp.eq.s32.totalorder %v1002, 1
  %v1004 = vsel %vm1003, %v998, %v969
  %1006 = vrot.lane.b32.xlu0 %v1004, 32
  %v1007 = vpop.permute.xlu0 %1006
  %v1009 = vsel %vm116, %v1007, 0.0
  %1010 = vst [vmem:[%s6] sm:$0xff] %v1009
  // Predicated region
  $region26: #{pallas_forward.1} parent=0 // pred_check
    _
  $region27: #{pallas_forward.1} parent=0 // pred_check_branch
    %1012 = sbr.rel (0) target = $region29
  $region28: #{pallas_forward.1} parent=0 // pred_region
    _
  $region29: #{pallas_forward.1} parent=0 // pred_fallthru
    _
  // Predicated region
  $region30: #{pallas_forward.1} parent=0 // pred_check
    _
  $region31: #{pallas_forward.1} parent=0 // pred_check_branch
    %1014 = sbr.rel (0) target = $region33
  $region32: #{pallas_forward.1} parent=0 // pred_region
    _
  $region33: #{pallas_forward.1} parent=0 // pred_fallthru
    _

</llo_original>
